<compile_context>
chip_gen: v7x
topology: tpu7x:2x2x1
jax: 0.10.0
libtpu: 0.0.40
codegen_flags: <defaults>
</compile_context>

<pallas_src>
import jax
import jax.numpy as jnp
from jax.experimental import pallas as pl
from jax.experimental.pallas import tpu as pltpu

LEAKY_SLOPE = 0.1
BN_EPS = 1e-5
TM_MAX = 512                     # max row tile of the im2col GEMM
VMEM_LIMIT = 48 * 1024 * 1024    # fits v7x (64 MiB physical) and v5e/v6e


def _round_up(v, m):
    return ((v + m - 1) // m) * m


# ---------------------------------------------------------------------------
# Pallas kernels
# ---------------------------------------------------------------------------
def _gemm_stats_kernel(p_ref, w_ref, y_ref, sum_ref, sq_ref):
    """im2col GEMM tile (bf16 in, f32 acc) + per-block channel sum / sumsq.

    No cross-iteration state: every grid step writes its own partial stats,
    so the grid axis is fully parallel (megacore-safe on v7x).
    """
    acc = jnp.dot(p_ref[...], w_ref[...], preferred_element_type=jnp.float32)

    # Dense (un-padded) bf16 activation back to HBM: only c_out valid lanes.
    c_out = y_ref.shape[-1]
    y_ref[...] = acc[:, :c_out].astype(y_ref.dtype)

    # Channel statistics on the MXU (ones @ acc) instead of XLU reductions +
    # concatenate; every row of the (8, C) result holds the same column sum.
    ones = jnp.ones((8, acc.shape[0]), jnp.float32)
    sum_ref[...] = jnp.dot(ones, acc, preferred_element_type=jnp.float32)
    sq_ref[...] = jnp.dot(ones, acc * acc, preferred_element_type=jnp.float32)


def _bn_lrelu_kernel(y_ref, scale_ref, shift_ref, o_ref):
    """Fused affine BatchNorm (precomputed scale/shift) + LeakyReLU(0.1)."""
    z = y_ref[...].astype(jnp.float32) * scale_ref[...] + shift_ref[...]
    o_ref[...] = jnp.where(z >= 0.0, z, LEAKY_SLOPE * z).astype(o_ref.dtype)


# ---------------------------------------------------------------------------
# Glue: im2col, per-stage driver
# ---------------------------------------------------------------------------
def _im2col(x_nhwc, stride):
    """x: (N, H, W, C) -> bf16 patches (N*Ho*Wo, 9*C); 3x3 kernel, padding=1."""
    # TODO(synk): replace with in-kernel accumulation of 9 shifted matmuls so
    # the ~9x-expanded patch matrix never round-trips through HBM.
    x = x_nhwc.astype(jnp.bfloat16)
    n, h, w, c = x.shape
    xp = jnp.pad(x, ((0, 0), (1, 1), (1, 1), (0, 0)))
    ho = (h + 2 - 3) // stride + 1
    wo = (w + 2 - 3) // stride + 1
    cols = []
    for dh in range(3):
        for dw in range(3):
            cols.append(
                xp[:, dh:dh + stride * (ho - 1) + 1:stride,
                      dw:dw + stride * (wo - 1) + 1:stride, :])
    patches = jnp.stack(cols, axis=3)                   # (N, Ho, Wo, 9, C)
    return patches.reshape(n * ho * wo, 9 * c), ho, wo


def _conv_bn_lrelu(x_nhwc, w_hwio, gamma, beta, stride, out_dtype):
    n, h, w, c_in = x_nhwc.shape
    c_out = w_hwio.shape[-1]

    patches, ho, wo = _im2col(x_nhwc, stride)           # (m, k) bf16
    m, k = patches.shape
    tm = min(TM_MAX, _round_up(m, 8))                   # big tile, no waste at small m
    m_pad = _round_up(m, tm)
    k_pad = _round_up(k, 16)                            # bf16 sublane multiple only
    c_pad = _round_up(c_out, 128)                       # MXU-aligned N for the GEMM
    nb = m_pad // tm

    p_pad = jnp.pad(patches, ((0, m_pad - m), (0, k_pad - k)))
    w_mat = w_hwio.reshape(9 * c_in, c_out).astype(jnp.bfloat16)
    w_pad = jnp.pad(w_mat, ((0, k_pad - k), (0, c_pad - c_out)))
    # TODO(synk): for large-channel configs add a K grid axis with a VMEM f32
    # accumulator and a 256-wide Cout tile so the weight block fits v7x's
    # 64 MiB VMEM and fills v6e/v7x's 256x256 MXUs.

    # --- kernel 1: GEMM + per-block channel statistics ----------------------
    y_dense, sum_part, sq_part = pl.pallas_call(
        _gemm_stats_kernel,
        out_shape=(
            jax.ShapeDtypeStruct((m_pad, c_out), jnp.bfloat16),
            jax.ShapeDtypeStruct((nb * 8, c_pad), jnp.float32),
            jax.ShapeDtypeStruct((nb * 8, c_pad), jnp.float32),
        ),
        grid_spec=pltpu.PrefetchScalarGridSpec(
            num_scalar_prefetch=0,
            grid=(nb,),
            in_specs=[
                pl.BlockSpec((tm, k_pad), lambda i: (i, 0)),
                pl.BlockSpec((k_pad, c_pad), lambda i: (0, 0)),
            ],
            out_specs=(
                pl.BlockSpec((tm, c_out), lambda i: (i, 0)),
                pl.BlockSpec((8, c_pad), lambda i: (i, 0)),
                pl.BlockSpec((8, c_pad), lambda i: (i, 0)),
            ),
        ),
        compiler_params=pltpu.CompilerParams(
            dimension_semantics=("parallel",),
            vmem_limit_bytes=VMEM_LIMIT),
    )(p_pad, w_pad)

    # Training-mode BN statistics (biased variance over N*Ho*Wo); the tiny
    # per-block partials are reduced in JAX (keeps the GEMM axis parallel).
    ch_sum = jnp.sum(sum_part.reshape(nb, 8, c_pad)[:, 0, :c_out], axis=0)
    ch_sq = jnp.sum(sq_part.reshape(nb, 8, c_pad)[:, 0, :c_out], axis=0)
    mean = ch_sum / m
    # NOTE: E[x^2]-E[x]^2 in f32 is fine at encoder activation scales; switch
    # to a two-pass / Welford variance if inputs can be very large-magnitude.
    var = jnp.maximum(ch_sq / m - mean * mean, 0.0)
    scale = gamma / jnp.sqrt(var + BN_EPS)
    shift = beta - mean * scale

    # --- kernel 2: fused BN affine + LeakyReLU (lane-dense layout) ----------
    out = pl.pallas_call(
        _bn_lrelu_kernel,
        out_shape=jax.ShapeDtypeStruct((m_pad, c_out), out_dtype),
        grid_spec=pltpu.PrefetchScalarGridSpec(
            num_scalar_prefetch=0,
            grid=(nb,),
            in_specs=[
                pl.BlockSpec((tm, c_out), lambda i: (i, 0)),
                pl.BlockSpec((1, c_out), lambda i: (0, 0)),
                pl.BlockSpec((1, c_out), lambda i: (0, 0)),
            ],
            out_specs=pl.BlockSpec((tm, c_out), lambda i: (i, 0)),
        ),
        compiler_params=pltpu.CompilerParams(
            dimension_semantics=("parallel",),
            vmem_limit_bytes=VMEM_LIMIT),
    )(y_dense, scale[None, :], shift[None, :])

    return out[:m].reshape(n, ho, wo, c_out)


# ---------------------------------------------------------------------------
# Encoder forward (matches the PyTorch module's forward)
# ---------------------------------------------------------------------------
@jax.jit
def encoder_forward(x_nchw, w1, g1, b1, w2, g2, b2):
    # NCHW (PyTorch) -> NHWC (TPU lane-friendly layout)
    x = jnp.transpose(x_nchw, (0, 2, 3, 1))
    # stage 1 feeds stage 2, so keep its activations in bf16; final stage f32.
    y = _conv_bn_lrelu(x, w1, g1, b1, stride=2, out_dtype=jnp.bfloat16)
    y = _conv_bn_lrelu(y, w2, g2, b2, stride=1, out_dtype=jnp.float32)
    return jnp.transpose(y, (0, 3, 1, 2))              # back to NCHW


def init_params(key, ch_in, ch_out):
    k1, k2 = jax.random.split(key)
    # conv weights in HWIO; kaiming-ish deterministic init.
    w1 = jax.random.normal(k1, (3, 3, ch_in, ch_out), jnp.float32) * (
        1.0 / jnp.sqrt(9.0 * ch_in))
    w2 = jax.random.normal(k2, (3, 3, ch_out, ch_out), jnp.float32) * (
        1.0 / jnp.sqrt(9.0 * ch_out))
    # BatchNorm affine params at PyTorch defaults: gamma=1, beta=0.
    g1 = jnp.ones((ch_out,), jnp.float32)
    b1 = jnp.zeros((ch_out,), jnp.float32)
    g2 = jnp.ones((ch_out,), jnp.float32)
    b2 = jnp.zeros((ch_out,), jnp.float32)
    return w1, g1, b1, w2, g2, b2


if __name__ == "__main__":
    key = jax.random.PRNGKey(0)
    kx, kp = jax.random.split(key)

    batch, ch_in, ch_out, hw = 2, 4, 8, 16
    x = jax.random.normal(kx, (batch, ch_in, hw, hw), jnp.float32)  # NCHW
    params = init_params(kp, ch_in, ch_out)

    out = encoder_forward(x, *params)
    out = jax.block_until_ready(out)

    assert out.shape == (batch, ch_out, hw // 2, hw // 2), out.shape
    assert bool(jnp.all(jnp.isfinite(out)))
    print("KERNEL_OK")
</pallas_src>

<mosaic_0001>
module attributes {stable_mosaic.version = 11 : i64} {
  func.func @_gemm_stats_kernel(%arg0: i32, %arg1: memref<128x48xbf16, #tpu.memory_space<vmem>>, %arg2: memref<48x128xbf16, #tpu.memory_space<vmem>>, %arg3: memref<128x8xbf16, #tpu.memory_space<vmem>>, %arg4: memref<8x128xf32, #tpu.memory_space<vmem>>, %arg5: memref<8x128xf32, #tpu.memory_space<vmem>>) attributes {dimension_semantics = [#tpu.dimension_semantics<parallel>], iteration_bounds = array<i64: 1>, scalar_prefetch = 0 : i64, scratch_operands = 0 : i64, tpu.core_type = #tpu.core_type<tc>, window_params = [{transform_indices = @transform_0, window_bounds = array<i64: 128, 48>}, {pipeline_mode = #tpu.pipeline_mode<synchronous>, transform_indices = @transform_1, window_bounds = array<i64: 48, 128>}, {transform_indices = @transform_2, window_bounds = array<i64: 128, 8>}, {transform_indices = @transform_3, window_bounds = array<i64: 8, 128>}, {transform_indices = @transform_4, window_bounds = array<i64: 8, 128>}]} {
    %c0 = arith.constant 0 : index
    %c0_0 = arith.constant 0 : index
    %0 = vector.load %arg1[%c0, %c0_0] : memref<128x48xbf16, #tpu.memory_space<vmem>>, vector<128x48xbf16>
    %c0_1 = arith.constant 0 : index
    %c0_2 = arith.constant 0 : index
    %1 = vector.load %arg2[%c0_1, %c0_2] : memref<48x128xbf16, #tpu.memory_space<vmem>>, vector<48x128xbf16>
    %cst = arith.constant dense<0.000000e+00> : vector<128x128xf32>
    %2 = tpu.matmul %0, %1, %cst {dimension_numbers = #tpu.dot_dimension_numbers<[1], [0], [0], [1], [0, 0, 1, 1], [], []>} : vector<128x48xbf16>, vector<48x128xbf16>, vector<128x128xf32> -> vector<128x128xf32>
    %3 = vector.extract_strided_slice %2 {offsets = [0, 0], sizes = [128, 8], strides = [1, 1]} : vector<128x128xf32> to vector<128x8xf32>
    %4 = arith.truncf %3 : vector<128x8xf32> to vector<128x8xbf16>
    %c0_3 = arith.constant 0 : index
    %c0_4 = arith.constant 0 : index
    %5 = vector.load %arg3[%c0_3, %c0_4] : memref<128x8xbf16, #tpu.memory_space<vmem>>, vector<128x8xbf16>
    tpu.vector_store %arg3[%c0_3, %c0_4], %4 {strides = array<i32>} : memref<128x8xbf16, #tpu.memory_space<vmem>>, vector<128x8xbf16>,
    %cst_5 = arith.constant 1.000000e+00 : f32
    %6 = vector.broadcast %cst_5 : f32 to vector<8x128xf32>
    %cst_6 = arith.constant dense<0.000000e+00> : vector<8x128xf32>
    %7 = tpu.matmul %6, %2, %cst_6 {dimension_numbers = #tpu.dot_dimension_numbers<[1], [0], [0], [1], [0, 0, 1, 1], [], []>} : vector<8x128xf32>, vector<128x128xf32>, vector<8x128xf32> -> vector<8x128xf32>
    %c0_7 = arith.constant 0 : index
    %c0_8 = arith.constant 0 : index
    %8 = vector.load %arg4[%c0_7, %c0_8] : memref<8x128xf32, #tpu.memory_space<vmem>>, vector<8x128xf32>
    tpu.vector_store %arg4[%c0_7, %c0_8], %7 {strides = array<i32>} : memref<8x128xf32, #tpu.memory_space<vmem>>, vector<8x128xf32>,
    %9 = arith.mulf %2, %2 : vector<128x128xf32>
    %cst_9 = arith.constant dense<0.000000e+00> : vector<8x128xf32>
    %10 = tpu.matmul %6, %9, %cst_9 {dimension_numbers = #tpu.dot_dimension_numbers<[1], [0], [0], [1], [0, 0, 1, 1], [], []>} : vector<8x128xf32>, vector<128x128xf32>, vector<8x128xf32> -> vector<8x128xf32>
    %c0_10 = arith.constant 0 : index
    %c0_11 = arith.constant 0 : index
    %11 = vector.load %arg5[%c0_10, %c0_11] : memref<8x128xf32, #tpu.memory_space<vmem>>, vector<8x128xf32>
    tpu.vector_store %arg5[%c0_10, %c0_11], %10 {strides = array<i32>} : memref<8x128xf32, #tpu.memory_space<vmem>>, vector<8x128xf32>,
    return
  }
  func.func @transform_0(%arg0: i32) -> (i32, i32) {
    %c0_i32 = arith.constant 0 : i32
    %c0_i32_0 = arith.constant 0 : i32
    return %arg0, %c0_i32 : i32, i32
  }
  func.func @transform_1(%arg0: i32) -> (i32, i32) {
    %c0_i32 = arith.constant 0 : i32
    %c0_i32_0 = arith.constant 0 : i32
    %c0_i32_1 = arith.constant 0 : i32
    return %c0_i32, %c0_i32_0 : i32, i32
  }
  func.func @transform_2(%arg0: i32) -> (i32, i32) {
    %c0_i32 = arith.constant 0 : i32
    %c0_i32_0 = arith.constant 0 : i32
    return %arg0, %c0_i32 : i32, i32
  }
  func.func @transform_3(%arg0: i32) -> (i32, i32) {
    %c0_i32 = arith.constant 0 : i32
    %c0_i32_0 = arith.constant 0 : i32
    return %arg0, %c0_i32 : i32, i32
  }
  func.func @transform_4(%arg0: i32) -> (i32, i32) {
    %c0_i32 = arith.constant 0 : i32
    %c0_i32_0 = arith.constant 0 : i32
    return %arg0, %c0_i32 : i32, i32
  }
}

module attributes {stable_mosaic.version = 11 : i64} {
  func.func @_bn_lrelu_kernel(%arg0: i32, %arg1: memref<128x8xbf16, #tpu.memory_space<vmem>>, %arg2: memref<1x8xf32, #tpu.memory_space<vmem>>, %arg3: memref<1x8xf32, #tpu.memory_space<vmem>>, %arg4: memref<128x8xbf16, #tpu.memory_space<vmem>>) attributes {dimension_semantics = [#tpu.dimension_semantics<parallel>], iteration_bounds = array<i64: 1>, scalar_prefetch = 0 : i64, scratch_operands = 0 : i64, tpu.core_type = #tpu.core_type<tc>, window_params = [{transform_indices = @transform_0, window_bounds = array<i64: 128, 8>}, {pipeline_mode = #tpu.pipeline_mode<synchronous>, transform_indices = @transform_1, window_bounds = array<i64: 1, 8>}, {pipeline_mode = #tpu.pipeline_mode<synchronous>, transform_indices = @transform_2, window_bounds = array<i64: 1, 8>}, {transform_indices = @transform_3, window_bounds = array<i64: 128, 8>}]} {
    %c0 = arith.constant 0 : index
    %c0_0 = arith.constant 0 : index
    %0 = vector.load %arg1[%c0, %c0_0] : memref<128x8xbf16, #tpu.memory_space<vmem>>, vector<128x8xbf16>
    %1 = arith.extf %0 : vector<128x8xbf16> to vector<128x8xf32>
    %c0_1 = arith.constant 0 : index
    %c0_2 = arith.constant 0 : index
    %2 = vector.load %arg2[%c0_1, %c0_2] : memref<1x8xf32, #tpu.memory_space<vmem>>, vector<1x8xf32>
    %3 = vector.broadcast %2 : vector<1x8xf32> to vector<128x8xf32>
    %4 = arith.mulf %1, %3 : vector<128x8xf32>
    %c0_3 = arith.constant 0 : index
    %c0_4 = arith.constant 0 : index
    %5 = vector.load %arg3[%c0_3, %c0_4] : memref<1x8xf32, #tpu.memory_space<vmem>>, vector<1x8xf32>
    %6 = vector.broadcast %5 : vector<1x8xf32> to vector<128x8xf32>
    %7 = arith.addf %4, %6 : vector<128x8xf32>
    %cst = arith.constant 0.000000e+00 : f32
    %8 = vector.broadcast %cst : f32 to vector<128x8xf32>
    %9 = arith.cmpf oge, %7, %8 : vector<128x8xf32>
    %cst_5 = arith.constant 1.000000e-01 : f32
    %10 = vector.broadcast %cst_5 : f32 to vector<128x8xf32>
    %11 = arith.mulf %10, %7 : vector<128x8xf32>
    %12 = arith.select %9, %7, %11 : vector<128x8xi1>, vector<128x8xf32>
    %13 = arith.truncf %12 : vector<128x8xf32> to vector<128x8xbf16>
    %c0_6 = arith.constant 0 : index
    %c0_7 = arith.constant 0 : index
    %14 = vector.load %arg4[%c0_6, %c0_7] : memref<128x8xbf16, #tpu.memory_space<vmem>>, vector<128x8xbf16>
    tpu.vector_store %arg4[%c0_6, %c0_7], %13 {strides = array<i32>} : memref<128x8xbf16, #tpu.memory_space<vmem>>, vector<128x8xbf16>,
    return
  }
  func.func @transform_0(%arg0: i32) -> (i32, i32) {
    %c0_i32 = arith.constant 0 : i32
    %c0_i32_0 = arith.constant 0 : i32
    return %arg0, %c0_i32 : i32, i32
  }
  func.func @transform_1(%arg0: i32) -> (i32, i32) {
    %c0_i32 = arith.constant 0 : i32
    %c0_i32_0 = arith.constant 0 : i32
    %c0_i32_1 = arith.constant 0 : i32
    return %c0_i32, %c0_i32_0 : i32, i32
  }
  func.func @transform_2(%arg0: i32) -> (i32, i32) {
    %c0_i32 = arith.constant 0 : i32
    %c0_i32_0 = arith.constant 0 : i32
    %c0_i32_1 = arith.constant 0 : i32
    return %c0_i32, %c0_i32_0 : i32, i32
  }
  func.func @transform_3(%arg0: i32) -> (i32, i32) {
    %c0_i32 = arith.constant 0 : i32
    %c0_i32_0 = arith.constant 0 : i32
    return %arg0, %c0_i32 : i32, i32
  }
}

module attributes {stable_mosaic.version = 11 : i64} {
  func.func @_bn_lrelu_kernel(%arg0: i32, %arg1: memref<128x8xbf16, #tpu.memory_space<vmem>>, %arg2: memref<1x8xf32, #tpu.memory_space<vmem>>, %arg3: memref<1x8xf32, #tpu.memory_space<vmem>>, %arg4: memref<128x8xf32, #tpu.memory_space<vmem>>) attributes {dimension_semantics = [#tpu.dimension_semantics<parallel>], iteration_bounds = array<i64: 1>, scalar_prefetch = 0 : i64, scratch_operands = 0 : i64, tpu.core_type = #tpu.core_type<tc>, window_params = [{transform_indices = @transform_0, window_bounds = array<i64: 128, 8>}, {pipeline_mode = #tpu.pipeline_mode<synchronous>, transform_indices = @transform_1, window_bounds = array<i64: 1, 8>}, {pipeline_mode = #tpu.pipeline_mode<synchronous>, transform_indices = @transform_2, window_bounds = array<i64: 1, 8>}, {transform_indices = @transform_3, window_bounds = array<i64: 128, 8>}]} {
    %c0 = arith.constant 0 : index
    %c0_0 = arith.constant 0 : index
    %0 = vector.load %arg1[%c0, %c0_0] : memref<128x8xbf16, #tpu.memory_space<vmem>>, vector<128x8xbf16>
    %1 = arith.extf %0 : vector<128x8xbf16> to vector<128x8xf32>
    %c0_1 = arith.constant 0 : index
    %c0_2 = arith.constant 0 : index
    %2 = vector.load %arg2[%c0_1, %c0_2] : memref<1x8xf32, #tpu.memory_space<vmem>>, vector<1x8xf32>
    %3 = vector.broadcast %2 : vector<1x8xf32> to vector<128x8xf32>
    %4 = arith.mulf %1, %3 : vector<128x8xf32>
    %c0_3 = arith.constant 0 : index
    %c0_4 = arith.constant 0 : index
    %5 = vector.load %arg3[%c0_3, %c0_4] : memref<1x8xf32, #tpu.memory_space<vmem>>, vector<1x8xf32>
    %6 = vector.broadcast %5 : vector<1x8xf32> to vector<128x8xf32>
    %7 = arith.addf %4, %6 : vector<128x8xf32>
    %cst = arith.constant 0.000000e+00 : f32
    %8 = vector.broadcast %cst : f32 to vector<128x8xf32>
    %9 = arith.cmpf oge, %7, %8 : vector<128x8xf32>
    %cst_5 = arith.constant 1.000000e-01 : f32
    %10 = vector.broadcast %cst_5 : f32 to vector<128x8xf32>
    %11 = arith.mulf %10, %7 : vector<128x8xf32>
    %12 = arith.select %9, %7, %11 : vector<128x8xi1>, vector<128x8xf32>
    %c0_6 = arith.constant 0 : index
    %c0_7 = arith.constant 0 : index
    %13 = vector.load %arg4[%c0_6, %c0_7] : memref<128x8xf32, #tpu.memory_space<vmem>>, vector<128x8xf32>
    tpu.vector_store %arg4[%c0_6, %c0_7], %12 {strides = array<i32>} : memref<128x8xf32, #tpu.memory_space<vmem>>, vector<128x8xf32>,
    return
  }
  func.func @transform_0(%arg0: i32) -> (i32, i32) {
    %c0_i32 = arith.constant 0 : i32
    %c0_i32_0 = arith.constant 0 : i32
    return %arg0, %c0_i32 : i32, i32
  }
  func.func @transform_1(%arg0: i32) -> (i32, i32) {
    %c0_i32 = arith.constant 0 : i32
    %c0_i32_0 = arith.constant 0 : i32
    %c0_i32_1 = arith.constant 0 : i32
    return %c0_i32, %c0_i32_0 : i32, i32
  }
  func.func @transform_2(%arg0: i32) -> (i32, i32) {
    %c0_i32 = arith.constant 0 : i32
    %c0_i32_0 = arith.constant 0 : i32
    %c0_i32_1 = arith.constant 0 : i32
    return %c0_i32, %c0_i32_0 : i32, i32
  }
  func.func @transform_3(%arg0: i32) -> (i32, i32) {
    %c0_i32 = arith.constant 0 : i32
    %c0_i32_0 = arith.constant 0 : i32
    return %arg0, %c0_i32 : i32, i32
  }
}

module attributes {stable_mosaic.version = 11 : i64} {
  func.func @_gemm_stats_kernel(%arg0: i32, %arg1: memref<128x80xbf16, #tpu.memory_space<vmem>>, %arg2: memref<80x128xbf16, #tpu.memory_space<vmem>>, %arg3: memref<128x8xbf16, #tpu.memory_space<vmem>>, %arg4: memref<8x128xf32, #tpu.memory_space<vmem>>, %arg5: memref<8x128xf32, #tpu.memory_space<vmem>>) attributes {dimension_semantics = [#tpu.dimension_semantics<parallel>], iteration_bounds = array<i64: 1>, scalar_prefetch = 0 : i64, scratch_operands = 0 : i64, tpu.core_type = #tpu.core_type<tc>, window_params = [{transform_indices = @transform_0, window_bounds = array<i64: 128, 80>}, {pipeline_mode = #tpu.pipeline_mode<synchronous>, transform_indices = @transform_1, window_bounds = array<i64: 80, 128>}, {transform_indices = @transform_2, window_bounds = array<i64: 128, 8>}, {transform_indices = @transform_3, window_bounds = array<i64: 8, 128>}, {transform_indices = @transform_4, window_bounds = array<i64: 8, 128>}]} {
    %c0 = arith.constant 0 : index
    %c0_0 = arith.constant 0 : index
    %0 = vector.load %arg1[%c0, %c0_0] : memref<128x80xbf16, #tpu.memory_space<vmem>>, vector<128x80xbf16>
    %c0_1 = arith.constant 0 : index
    %c0_2 = arith.constant 0 : index
    %1 = vector.load %arg2[%c0_1, %c0_2] : memref<80x128xbf16, #tpu.memory_space<vmem>>, vector<80x128xbf16>
    %cst = arith.constant dense<0.000000e+00> : vector<128x128xf32>
    %2 = tpu.matmul %0, %1, %cst {dimension_numbers = #tpu.dot_dimension_numbers<[1], [0], [0], [1], [0, 0, 1, 1], [], []>} : vector<128x80xbf16>, vector<80x128xbf16>, vector<128x128xf32> -> vector<128x128xf32>
    %3 = vector.extract_strided_slice %2 {offsets = [0, 0], sizes = [128, 8], strides = [1, 1]} : vector<128x128xf32> to vector<128x8xf32>
    %4 = arith.truncf %3 : vector<128x8xf32> to vector<128x8xbf16>
    %c0_3 = arith.constant 0 : index
    %c0_4 = arith.constant 0 : index
    %5 = vector.load %arg3[%c0_3, %c0_4] : memref<128x8xbf16, #tpu.memory_space<vmem>>, vector<128x8xbf16>
    tpu.vector_store %arg3[%c0_3, %c0_4], %4 {strides = array<i32>} : memref<128x8xbf16, #tpu.memory_space<vmem>>, vector<128x8xbf16>,
    %cst_5 = arith.constant 1.000000e+00 : f32
    %6 = vector.broadcast %cst_5 : f32 to vector<8x128xf32>
    %cst_6 = arith.constant dense<0.000000e+00> : vector<8x128xf32>
    %7 = tpu.matmul %6, %2, %cst_6 {dimension_numbers = #tpu.dot_dimension_numbers<[1], [0], [0], [1], [0, 0, 1, 1], [], []>} : vector<8x128xf32>, vector<128x128xf32>, vector<8x128xf32> -> vector<8x128xf32>
    %c0_7 = arith.constant 0 : index
    %c0_8 = arith.constant 0 : index
    %8 = vector.load %arg4[%c0_7, %c0_8] : memref<8x128xf32, #tpu.memory_space<vmem>>, vector<8x128xf32>
    tpu.vector_store %arg4[%c0_7, %c0_8], %7 {strides = array<i32>} : memref<8x128xf32, #tpu.memory_space<vmem>>, vector<8x128xf32>,
    %9 = arith.mulf %2, %2 : vector<128x128xf32>
    %cst_9 = arith.constant dense<0.000000e+00> : vector<8x128xf32>
    %10 = tpu.matmul %6, %9, %cst_9 {dimension_numbers = #tpu.dot_dimension_numbers<[1], [0], [0], [1], [0, 0, 1, 1], [], []>} : vector<8x128xf32>, vector<128x128xf32>, vector<8x128xf32> -> vector<8x128xf32>
    %c0_10 = arith.constant 0 : index
    %c0_11 = arith.constant 0 : index
    %11 = vector.load %arg5[%c0_10, %c0_11] : memref<8x128xf32, #tpu.memory_space<vmem>>, vector<8x128xf32>
    tpu.vector_store %arg5[%c0_10, %c0_11], %10 {strides = array<i32>} : memref<8x128xf32, #tpu.memory_space<vmem>>, vector<8x128xf32>,
    return
  }
  func.func @transform_0(%arg0: i32) -> (i32, i32) {
    %c0_i32 = arith.constant 0 : i32
    %c0_i32_0 = arith.constant 0 : i32
    return %arg0, %c0_i32 : i32, i32
  }
  func.func @transform_1(%arg0: i32) -> (i32, i32) {
    %c0_i32 = arith.constant 0 : i32
    %c0_i32_0 = arith.constant 0 : i32
    %c0_i32_1 = arith.constant 0 : i32
    return %c0_i32, %c0_i32_0 : i32, i32
  }
  func.func @transform_2(%arg0: i32) -> (i32, i32) {
    %c0_i32 = arith.constant 0 : i32
    %c0_i32_0 = arith.constant 0 : i32
    return %arg0, %c0_i32 : i32, i32
  }
  func.func @transform_3(%arg0: i32) -> (i32, i32) {
    %c0_i32 = arith.constant 0 : i32
    %c0_i32_0 = arith.constant 0 : i32
    return %arg0, %c0_i32 : i32, i32
  }
  func.func @transform_4(%arg0: i32) -> (i32, i32) {
    %c0_i32 = arith.constant 0 : i32
    %c0_i32_0 = arith.constant 0 : i32
    return %arg0, %c0_i32 : i32, i32
  }
}

</mosaic_0001>

<llo_original>
// kernel: encoder_forward.5
$region0: #{encoder_forward.5}
  #allocation0 [shape = 'u32[]', space=smem, size = 0x4, offset = 0x4, fixed_abs, tag = 'smem constant byte address 0x4 - core index']
  #allocation1 [shape = 'u32[144,128]{1,0:T(1,128)}', space=vmem, size = 0x12000, scoped, tag = 'internal scratch']
  %s0 = inlined_call_operand.vmem [shape: bf16[128,8], index: 0, kind: input, shape index: {}]
  %s1 = inlined_call_operand.vmem [shape: f32[1,8], index: 1, kind: input, shape index: {}]
  %s2 = inlined_call_operand.vmem [shape: f32[1,8], index: 2, kind: input, shape index: {}]
  %s3 = inlined_call_operand.vmem [shape: bf16[128,8], index: 3, kind: output, shape index: {}]
  %s4 = sld [smem:[#allocation0]]
  $region22: #{encoder_forward.5} parent=0
    _
  %s6 = ssub.s32 1, %s4
  %s7 = scalar_select 0, %s6, %s4
  // Predicated region
  $region2: #{encoder_forward.5} parent=0 // pred_check
    _
  $region3: #{encoder_forward.5} parent=0 // pred_check_branch
    %9 = sbr.rel (0) target = $region5
  $region4: #{encoder_forward.5} parent=0 // pred_region
    _
  $region5: #{encoder_forward.5} parent=0 // pred_fallthru
    _
  // Predicated region
  $region6: #{encoder_forward.5} parent=0 // pred_check
    _
  $region7: #{encoder_forward.5} parent=0 // pred_check_branch
    %11 = sbr.rel (0) target = $region9
  $region8: #{encoder_forward.5} parent=0 // pred_region
    _
  $region9: #{encoder_forward.5} parent=0 // pred_fallthru
    _
  // Predicated region
  $region10: #{encoder_forward.5} parent=0 // pred_check
    _
  $region11: #{encoder_forward.5} parent=0 // pred_check_branch
    %13 = sbr.rel (0) target = $region13
  $region12: #{encoder_forward.5} parent=0 // pred_region
    _
  $region13: #{encoder_forward.5} parent=0 // pred_fallthru
    _
  %v14 = vld [vmem:[%s0] sm:$0xf]
  %v15 = vld [vmem:[%s0 + $0x4] sm:$0xf]
  %v16 = vld [vmem:[%s0 + $0x8] sm:$0xf]
  %v17 = vld [vmem:[%s0 + $0xc] sm:$0xf]
  %v18 = vld [vmem:[%s0 + $0x10] sm:$0xf]
  %v19 = vld [vmem:[%s0 + $0x14] sm:$0xf]
  %v20 = vld [vmem:[%s0 + $0x18] sm:$0xf]
  %v21 = vld [vmem:[%s0 + $0x1c] sm:$0xf]
  %v22 = vld [vmem:[%s0 + $0x20] sm:$0xf]
  %v23 = vld [vmem:[%s0 + $0x24] sm:$0xf]
  %v24 = vld [vmem:[%s0 + $0x28] sm:$0xf]
  %v25 = vld [vmem:[%s0 + $0x2c] sm:$0xf]
  %v26 = vld [vmem:[%s0 + $0x30] sm:$0xf]
  %v27 = vld [vmem:[%s0 + $0x34] sm:$0xf]
  %v28 = vld [vmem:[%s0 + $0x38] sm:$0xf]
  %v29 = vld [vmem:[%s0 + $0x3c] sm:$0xf]
  %v30 = vunpack.c.l.bf16 %v14
  %v31 = vunpack.c.l.bf16 %v15
  %v32 = vunpack.c.l.bf16 %v16
  %v33 = vunpack.c.l.bf16 %v17
  %v34 = vunpack.c.l.bf16 %v18
  %v35 = vunpack.c.l.bf16 %v19
  %v36 = vunpack.c.l.bf16 %v20
  %v37 = vunpack.c.l.bf16 %v21
  %v38 = vunpack.c.l.bf16 %v22
  %v39 = vunpack.c.l.bf16 %v23
  %v40 = vunpack.c.l.bf16 %v24
  %v41 = vunpack.c.l.bf16 %v25
  %v42 = vunpack.c.l.bf16 %v26
  %v43 = vunpack.c.l.bf16 %v27
  %v44 = vunpack.c.l.bf16 %v28
  %v45 = vunpack.c.l.bf16 %v29
  %v46 = vld [vmem:[%s1] sm:$0x1]
  %v48 = vlaneseq
  %v49 = vshrl.u32 %v48, 7
  %v50 = vsub.s32 0, %v49
  %v51 = vrot.slane %v46, %v50
  %v53 = vmul.f32 %v30, %v51
  %v54 = vmul.f32 %v31, %v51
  %v55 = vmul.f32 %v32, %v51
  %v56 = vmul.f32 %v33, %v51
  %v57 = vmul.f32 %v34, %v51
  %v58 = vmul.f32 %v35, %v51
  %v59 = vmul.f32 %v36, %v51
  %v60 = vmul.f32 %v37, %v51
  %v61 = vmul.f32 %v38, %v51
  %v62 = vmul.f32 %v39, %v51
  %v63 = vmul.f32 %v40, %v51
  %v64 = vmul.f32 %v41, %v51
  %v65 = vmul.f32 %v42, %v51
  %v66 = vmul.f32 %v43, %v51
  %v67 = vmul.f32 %v44, %v51
  %v68 = vmul.f32 %v45, %v51
  %v69 = vld [vmem:[%s2] sm:$0x1]
  %v71 = vlaneseq
  %v72 = vshrl.u32 %v71, 7
  %v73 = vsub.s32 0, %v72
  %v74 = vrot.slane %v69, %v73
  %v76 = vadd.f32 %v53, %v74
  %v77 = vadd.f32 %v54, %v74
  %v78 = vadd.f32 %v55, %v74
  %v79 = vadd.f32 %v56, %v74
  %v80 = vadd.f32 %v57, %v74
  %v81 = vadd.f32 %v58, %v74
  %v82 = vadd.f32 %v59, %v74
  %v83 = vadd.f32 %v60, %v74
  %v84 = vadd.f32 %v61, %v74
  %v85 = vadd.f32 %v62, %v74
  %v86 = vadd.f32 %v63, %v74
  %v87 = vadd.f32 %v64, %v74
  %v88 = vadd.f32 %v65, %v74
  %v89 = vadd.f32 %v66, %v74
  %v90 = vadd.f32 %v67, %v74
  %v91 = vadd.f32 %v68, %v74
  %vm92 = vcmp.ge.f32.partialorder %v76, 0.0
  %vm93 = vcmp.ge.f32.partialorder %v77, 0.0
  %vm94 = vcmp.ge.f32.partialorder %v78, 0.0
  %vm95 = vcmp.ge.f32.partialorder %v79, 0.0
  %vm96 = vcmp.ge.f32.partialorder %v80, 0.0
  %vm97 = vcmp.ge.f32.partialorder %v81, 0.0
  %vm98 = vcmp.ge.f32.partialorder %v82, 0.0
  %vm99 = vcmp.ge.f32.partialorder %v83, 0.0
  %vm100 = vcmp.ge.f32.partialorder %v84, 0.0
  %vm101 = vcmp.ge.f32.partialorder %v85, 0.0
  %vm102 = vcmp.ge.f32.partialorder %v86, 0.0
  %vm103 = vcmp.ge.f32.partialorder %v87, 0.0
  %vm104 = vcmp.ge.f32.partialorder %v88, 0.0
  %vm105 = vcmp.ge.f32.partialorder %v89, 0.0
  %vm106 = vcmp.ge.f32.partialorder %v90, 0.0
  %vm107 = vcmp.ge.f32.partialorder %v91, 0.0
  %v108 = vmul.f32 %v76, 0.1
  %v109 = vmul.f32 %v77, 0.1
  %v110 = vmul.f32 %v78, 0.1
  %v111 = vmul.f32 %v79, 0.1
  %v112 = vmul.f32 %v80, 0.1
  %v113 = vmul.f32 %v81, 0.1
  %v114 = vmul.f32 %v82, 0.1
  %v115 = vmul.f32 %v83, 0.1
  %v116 = vmul.f32 %v84, 0.1
  %v117 = vmul.f32 %v85, 0.1
  %v118 = vmul.f32 %v86, 0.1
  %v119 = vmul.f32 %v87, 0.1
  %v120 = vmul.f32 %v88, 0.1
  %v121 = vmul.f32 %v89, 0.1
  %v122 = vmul.f32 %v90, 0.1
  %v123 = vmul.f32 %v91, 0.1
  %v124 = vsel %vm92, %v76, %v108
  %v125 = vsel %vm93, %v77, %v109
  %v126 = vsel %vm94, %v78, %v110
  %v127 = vsel %vm95, %v79, %v111
  %v128 = vsel %vm96, %v80, %v112
  %v129 = vsel %vm97, %v81, %v113
  %v130 = vsel %vm98, %v82, %v114
  %v131 = vsel %vm99, %v83, %v115
  %v132 = vsel %vm100, %v84, %v116
  %v133 = vsel %vm101, %v85, %v117
  %v134 = vsel %vm102, %v86, %v118
  %v135 = vsel %vm103, %v87, %v119
  %v136 = vsel %vm104, %v88, %v120
  %v137 = vsel %vm105, %v89, %v121
  %v138 = vsel %vm106, %v90, %v122
  %v139 = vsel %vm107, %v91, %v123
  %v140 = vpack.c.bf16 %v125, %v124
  %v141 = vpack.c.bf16 %v127, %v126
  %v142 = vpack.c.bf16 %v129, %v128
  %v143 = vpack.c.bf16 %v131, %v130
  %v144 = vpack.c.bf16 %v133, %v132
  %v145 = vpack.c.bf16 %v135, %v134
  %v146 = vpack.c.bf16 %v137, %v136
  %v147 = vpack.c.bf16 %v139, %v138
  %v156 = vunpack.c.l.b16 %v140
  %v157 = vunpack.c.h.b16 %v140
  %v158 = vunpack.c.l.b16 %v141
  %v159 = vunpack.c.h.b16 %v141
  %v160 = vunpack.c.l.b16 %v142
  %v161 = vunpack.c.h.b16 %v142
  %v162 = vunpack.c.l.b16 %v143
  %v163 = vunpack.c.h.b16 %v143
  %v164 = vunpack.c.l.b16 %v144
  %v165 = vunpack.c.h.b16 %v144
  %v166 = vunpack.c.l.b16 %v145
  %v167 = vunpack.c.h.b16 %v145
  %v168 = vunpack.c.l.b16 %v146
  %v169 = vunpack.c.h.b16 %v146
  %v170 = vunpack.c.l.b16 %v147
  %v171 = vunpack.c.h.b16 %v147
  %v172 = vpack.c.b16 %v156, %v156
  %v173 = vpack.c.b16 %v157, %v157
  %v174 = vpack.c.b16 %v158, %v158
  %v175 = vpack.c.b16 %v159, %v159
  %v176 = vpack.c.b16 %v160, %v160
  %v177 = vpack.c.b16 %v161, %v161
  %v178 = vpack.c.b16 %v162, %v162
  %v179 = vpack.c.b16 %v163, %v163
  %v180 = vpack.c.b16 %v164, %v164
  %v181 = vpack.c.b16 %v165, %v165
  %v182 = vpack.c.b16 %v166, %v166
  %v183 = vpack.c.b16 %v167, %v167
  %v184 = vpack.c.b16 %v168, %v168
  %v185 = vpack.c.b16 %v169, %v169
  %v186 = vpack.c.b16 %v170, %v170
  %v187 = vpack.c.b16 %v171, %v171
  %vm204 = vcmask 60416
  %205 = vst.msk [vmem:[%s3] sm:$0xf] %vm204, %v172
  %206 = vst.msk [vmem:[%s3 + $0x4] sm:$0xf] %vm204, %v173
  %207 = vst.msk [vmem:[%s3 + $0x8] sm:$0xf] %vm204, %v174
  %208 = vst.msk [vmem:[%s3 + $0xc] sm:$0xf] %vm204, %v175
  %209 = vst.msk [vmem:[%s3 + $0x10] sm:$0xf] %vm204, %v176
  %210 = vst.msk [vmem:[%s3 + $0x14] sm:$0xf] %vm204, %v177
  %211 = vst.msk [vmem:[%s3 + $0x18] sm:$0xf] %vm204, %v178
  %212 = vst.msk [vmem:[%s3 + $0x1c] sm:$0xf] %vm204, %v179
  %213 = vst.msk [vmem:[%s3 + $0x20] sm:$0xf] %vm204, %v180
  %214 = vst.msk [vmem:[%s3 + $0x24] sm:$0xf] %vm204, %v181
  %215 = vst.msk [vmem:[%s3 + $0x28] sm:$0xf] %vm204, %v182
  %216 = vst.msk [vmem:[%s3 + $0x2c] sm:$0xf] %vm204, %v183
  %217 = vst.msk [vmem:[%s3 + $0x30] sm:$0xf] %vm204, %v184
  %218 = vst.msk [vmem:[%s3 + $0x34] sm:$0xf] %vm204, %v185
  %219 = vst.msk [vmem:[%s3 + $0x38] sm:$0xf] %vm204, %v186
  %220 = vst.msk [vmem:[%s3 + $0x3c] sm:$0xf] %vm204, %v187
  // Predicated region
  $region14: #{encoder_forward.5} parent=0 // pred_check
    _
  $region15: #{encoder_forward.5} parent=0 // pred_check_branch
    %222 = sbr.rel (0) target = $region17
  $region16: #{encoder_forward.5} parent=0 // pred_region
    _
  $region17: #{encoder_forward.5} parent=0 // pred_fallthru
    _
  // Predicated region
  $region18: #{encoder_forward.5} parent=0 // pred_check
    _
  $region19: #{encoder_forward.5} parent=0 // pred_check_branch
    %224 = sbr.rel (0) target = $region21
  $region20: #{encoder_forward.5} parent=0 // pred_region
    _
  $region21: #{encoder_forward.5} parent=0 // pred_fallthru
    _

// kernel: encoder_forward.4
$region0: #{encoder_forward.4}
  #allocation0 [shape = 'u32[]', space=smem, size = 0x4, offset = 0x4, fixed_abs, tag = 'smem constant byte address 0x4 - core index']
  #allocation1 [shape = 'u32[144,128]{1,0:T(1,128)}', space=vmem, size = 0x12000, scoped, tag = 'internal scratch']
  %s0 = inlined_call_operand.vmem [shape: bf16[128,48], index: 0, kind: input, shape index: {}]
  %s1 = inlined_call_operand.vmem [shape: bf16[48,128], index: 1, kind: input, shape index: {}]
  %s2 = inlined_call_operand.vmem [shape: bf16[128,8], index: 2, kind: output, shape index: {0}]
  %s3 = inlined_call_operand.vmem [shape: f32[8,128], index: 3, kind: output, shape index: {1}]
  %s4 = inlined_call_operand.vmem [shape: f32[8,128], index: 4, kind: output, shape index: {2}]
  %5 = xla_tuple %s2, %s3, %s4
  %s6 = sld [smem:[#allocation0]]
  $region34: #{encoder_forward.4} parent=0
    _
  %s8 = ssub.s32 1, %s6
  %s9 = scalar_select 0, %s8, %s6
  // Predicated region
  $region2: #{encoder_forward.4} parent=0 // pred_check
    _
  $region3: #{encoder_forward.4} parent=0 // pred_check_branch
    %11 = sbr.rel (0) target = $region5
  $region4: #{encoder_forward.4} parent=0 // pred_region
    _
  $region5: #{encoder_forward.4} parent=0 // pred_fallthru
    _
  // Predicated region
  $region6: #{encoder_forward.4} parent=0 // pred_check
    _
  $region7: #{encoder_forward.4} parent=0 // pred_check_branch
    %13 = sbr.rel (0) target = $region9
  $region8: #{encoder_forward.4} parent=0 // pred_region
    _
  $region9: #{encoder_forward.4} parent=0 // pred_fallthru
    _
  %v15 = vld [vmem:[%s0] sm:$0xf]
  %v16 = vld [vmem:[%s0 + $0x4] sm:$0xf]
  %v17 = vld [vmem:[%s0 + $0x8] sm:$0xf]
  %v18 = vld [vmem:[%s0 + $0xc] sm:$0xf]
  %v19 = vld [vmem:[%s0 + $0x10] sm:$0xf]
  %v20 = vld [vmem:[%s0 + $0x14] sm:$0xf]
  %v21 = vld [vmem:[%s0 + $0x18] sm:$0xf]
  %v22 = vld [vmem:[%s0 + $0x1c] sm:$0xf]
  %v23 = vld [vmem:[%s0 + $0x20] sm:$0xf]
  %v24 = vld [vmem:[%s0 + $0x24] sm:$0xf]
  %v25 = vld [vmem:[%s0 + $0x28] sm:$0xf]
  %v26 = vld [vmem:[%s0 + $0x2c] sm:$0xf]
  %v27 = vld [vmem:[%s0 + $0x30] sm:$0xf]
  %v28 = vld [vmem:[%s0 + $0x34] sm:$0xf]
  %v29 = vld [vmem:[%s0 + $0x38] sm:$0xf]
  %v30 = vld [vmem:[%s0 + $0x3c] sm:$0xf]
  %v31 = vld [vmem:[%s1] sm:$0xf]
  %v32 = vld [vmem:[%s1 + $0x4] sm:$0xf]
  %v33 = vld [vmem:[%s1 + $0x8] sm:$0xf]
  %v34 = vld [vmem:[%s1 + $0xc] sm:$0xf]
  %v35 = vld [vmem:[%s1 + $0x10] sm:$0xf]
  %v36 = vld [vmem:[%s1 + $0x14] sm:$0xf]
  %v53 = vunpack.c.l.b16 %v15
  %v54 = vunpack.c.l.b16 %v16
  %v55 = vunpack.c.l.b16 %v17
  %v56 = vunpack.c.l.b16 %v18
  %v57 = vunpack.c.l.b16 %v19
  %v58 = vunpack.c.l.b16 %v20
  %v59 = vunpack.c.l.b16 %v21
  %v60 = vunpack.c.l.b16 %v22
  %v61 = vunpack.c.l.b16 %v23
  %v62 = vunpack.c.l.b16 %v24
  %v63 = vunpack.c.l.b16 %v25
  %v64 = vunpack.c.l.b16 %v26
  %v65 = vunpack.c.l.b16 %v27
  %v66 = vunpack.c.l.b16 %v28
  %v67 = vunpack.c.l.b16 %v29
  %v68 = vunpack.c.l.b16 %v30
  %v69 = vpack.c.b16 %v54, %v53
  %v70 = vpack.c.b16 %v56, %v55
  %v71 = vpack.c.b16 %v58, %v57
  %v72 = vpack.c.b16 %v60, %v59
  %v73 = vpack.c.b16 %v62, %v61
  %v74 = vpack.c.b16 %v64, %v63
  %v75 = vpack.c.b16 %v66, %v65
  %v76 = vpack.c.b16 %v68, %v67
  %v83 = vunpack.c.l.b16 %v31
  %v84 = vunpack.c.l.b16 %v32
  %v85 = vunpack.c.l.b16 %v33
  %v86 = vunpack.c.l.b16 %v34
  %v87 = vunpack.c.l.b16 %v35
  %v88 = vunpack.c.l.b16 %v36
  %v89 = vpack.c.b16 %v84, %v83
  %v90 = vpack.c.b16 %v86, %v85
  %v91 = vpack.c.b16 %v88, %v87
  %vm95 = vcmask 392192
  %v97 = vsel %vm95, %v69, 0
  %v100 = vsel %vm95, %v70, 0
  %v103 = vsel %vm95, %v71, 0
  %v106 = vsel %vm95, %v72, 0
  %v109 = vsel %vm95, %v73, 0
  %v112 = vsel %vm95, %v74, 0
  %v115 = vsel %vm95, %v75, 0
  %v118 = vsel %vm95, %v76, 0
  %120 = vmatprep.subr.bf16.mxu0 0
  %121 = vmatpush1.bf16.msra.mxu0 %v89
  %122 = vmatprep.subr.bf16.mxu0 0
  %123 = vmatpush1.bf16.msra.mxu0 %v90
  %124 = vmatprep.subr.bf16.mxu0 0
  %125 = vmatpush1.bf16.msra.mxu0 %v91
  %126 = vmatprep.subr.bf16.mxu0 0
  %127 = vmatpush1.bf16.msra.mxu0 0
  %128 = vmatprep.subr.bf16.mxu0 0
  %129 = vmatpush1.bf16.msra.mxu0 0
  %130 = vmatprep.subr.bf16.mxu0 0
  %131 = vmatpush1.bf16.msra.mxu0 0
  %132 = vmatprep.subr.bf16.mxu0 0
  %133 = vmatpush1.bf16.msra.mxu0 0
  %134 = vmatprep.subr.bf16.mxu0 0
  %135 = vmatpush1.bf16.msra.mxu0 0
  %136 = vmatprep.subr.bf16.mxu0 0
  %137 = vmatpush1.bf16.msra.mxu0 0
  %138 = vmatprep.subr.bf16.mxu0 0
  %139 = vmatpush1.bf16.msra.mxu0 0
  %140 = vmatprep.subr.bf16.mxu0 0
  %141 = vmatpush1.bf16.msra.mxu0 0
  %142 = vmatprep.subr.bf16.mxu0 0
  %143 = vmatpush1.bf16.msra.mxu0 0
  %144 = vmatprep.subr.bf16.mxu0 0
  %145 = vmatpush1.bf16.msra.mxu0 0
  %146 = vmatprep.subr.bf16.mxu0 0
  %147 = vmatpush1.bf16.msra.mxu0 0
  %148 = vmatprep.subr.bf16.mxu0 0
  %149 = vmatpush1.bf16.msra.mxu0 0
  %150 = vmatprep.subr.bf16.mxu0 0
  %151 = vmatpush1.bf16.msra.mxu0 0
  %152 = vmatprep.mubr.bf16.mxu0 0
  %153 = vmatmul.mubr.bf16.gmra.mrb[0].mxu0 %v97
  %v154 = vpop.f32.mrb[0].mxu0
  %v155 = vadd.f32 0.0, %v154
  %v156 = vpop.f32.mrb[0].mxu0
  %v157 = vpop.f32.mrb[0].mxu0
  %v158 = vadd.f32 0.0, %v157
  %v159 = vpop.f32.mrb[0].mxu0
  %160 = vmatprep.mubr.bf16.mxu0 0
  %161 = vmatmul.mubr.bf16.gmra.mrb[0].mxu0 %v100
  %v162 = vpop.f32.mrb[0].mxu0
  %v163 = vadd.f32 0.0, %v162
  %v164 = vpop.f32.mrb[0].mxu0
  %v165 = vpop.f32.mrb[0].mxu0
  %v166 = vadd.f32 0.0, %v165
  %v167 = vpop.f32.mrb[0].mxu0
  %168 = vmatprep.mubr.bf16.mxu0 0
  %169 = vmatmul.mubr.bf16.gmra.mrb[0].mxu0 %v103
  %v170 = vpop.f32.mrb[0].mxu0
  %v171 = vadd.f32 0.0, %v170
  %v172 = vpop.f32.mrb[0].mxu0
  %v173 = vpop.f32.mrb[0].mxu0
  %v174 = vadd.f32 0.0, %v173
  %v175 = vpop.f32.mrb[0].mxu0
  %176 = vmatprep.mubr.bf16.mxu0 0
  %177 = vmatmul.mubr.bf16.gmra.mrb[0].mxu0 %v106
  %v178 = vpop.f32.mrb[0].mxu0
  %v179 = vadd.f32 0.0, %v178
  %v180 = vpop.f32.mrb[0].mxu0
  %v181 = vpop.f32.mrb[0].mxu0
  %v182 = vadd.f32 0.0, %v181
  %v183 = vpop.f32.mrb[0].mxu0
  %184 = vmatprep.mubr.bf16.mxu0 0
  %185 = vmatmul.mubr.bf16.gmra.mrb[0].mxu0 %v109
  %v186 = vpop.f32.mrb[0].mxu0
  %v187 = vadd.f32 0.0, %v186
  %v188 = vpop.f32.mrb[0].mxu0
  %v189 = vpop.f32.mrb[0].mxu0
  %v190 = vadd.f32 0.0, %v189
  %v191 = vpop.f32.mrb[0].mxu0
  %192 = vmatprep.mubr.bf16.mxu0 0
  %193 = vmatmul.mubr.bf16.gmra.mrb[0].mxu0 %v112
  %v194 = vpop.f32.mrb[0].mxu0
  %v195 = vadd.f32 0.0, %v194
  %v196 = vpop.f32.mrb[0].mxu0
  %v197 = vpop.f32.mrb[0].mxu0
  %v198 = vadd.f32 0.0, %v197
  %v199 = vpop.f32.mrb[0].mxu0
  %200 = vmatprep.mubr.bf16.mxu0 0
  %201 = vmatmul.mubr.bf16.gmra.mrb[0].mxu0 %v115
  %v202 = vpop.f32.mrb[0].mxu0
  %v203 = vadd.f32 0.0, %v202
  %v204 = vpop.f32.mrb[0].mxu0
  %v205 = vpop.f32.mrb[0].mxu0
  %v206 = vadd.f32 0.0, %v205
  %v207 = vpop.f32.mrb[0].mxu0
  %208 = vmatprep.mubr.bf16.mxu0 0
  %209 = vmatmul.mubr.bf16.gmra.mrb[0].mxu0 %v118
  %v210 = vpop.f32.mrb[0].mxu0
  %v211 = vadd.f32 0.0, %v210
  %v212 = vpop.f32.mrb[0].mxu0
  %v213 = vpop.f32.mrb[0].mxu0
  %v214 = vadd.f32 0.0, %v213
  %v215 = vpop.f32.mrb[0].mxu0
  %216 = vdwg.mxu0
  %v217 = vpack.c.bf16 %v158, %v155
  %v218 = vpack.c.bf16 %v166, %v163
  %v219 = vpack.c.bf16 %v174, %v171
  %v220 = vpack.c.bf16 %v182, %v179
  %v221 = vpack.c.bf16 %v190, %v187
  %v222 = vpack.c.bf16 %v198, %v195
  %v223 = vpack.c.bf16 %v206, %v203
  %v224 = vpack.c.bf16 %v214, %v211
  %v233 = vunpack.c.l.b16 %v217
  %v234 = vunpack.c.h.b16 %v217
  %v235 = vunpack.c.l.b16 %v218
  %v236 = vunpack.c.h.b16 %v218
  %v237 = vunpack.c.l.b16 %v219
  %v238 = vunpack.c.h.b16 %v219
  %v239 = vunpack.c.l.b16 %v220
  %v240 = vunpack.c.h.b16 %v220
  %v241 = vunpack.c.l.b16 %v221
  %v242 = vunpack.c.h.b16 %v221
  %v243 = vunpack.c.l.b16 %v222
  %v244 = vunpack.c.h.b16 %v222
  %v245 = vunpack.c.l.b16 %v223
  %v246 = vunpack.c.h.b16 %v223
  %v247 = vunpack.c.l.b16 %v224
  %v248 = vunpack.c.h.b16 %v224
  %v249 = vpack.c.b16 %v233, %v233
  %v250 = vpack.c.b16 %v234, %v234
  %v251 = vpack.c.b16 %v235, %v235
  %v252 = vpack.c.b16 %v236, %v236
  %v253 = vpack.c.b16 %v237, %v237
  %v254 = vpack.c.b16 %v238, %v238
  %v255 = vpack.c.b16 %v239, %v239
  %v256 = vpack.c.b16 %v240, %v240
  %v257 = vpack.c.b16 %v241, %v241
  %v258 = vpack.c.b16 %v242, %v242
  %v259 = vpack.c.b16 %v243, %v243
  %v260 = vpack.c.b16 %v244, %v244
  %v261 = vpack.c.b16 %v245, %v245
  %v262 = vpack.c.b16 %v246, %v246
  %v263 = vpack.c.b16 %v247, %v247
  %v264 = vpack.c.b16 %v248, %v248
  %vm281 = vcmask 60416
  %282 = vst.msk [vmem:[%s2] sm:$0xf] %vm281, %v249
  %283 = vst.msk [vmem:[%s2 + $0x4] sm:$0xf] %vm281, %v250
  %284 = vst.msk [vmem:[%s2 + $0x8] sm:$0xf] %vm281, %v251
  %285 = vst.msk [vmem:[%s2 + $0xc] sm:$0xf] %vm281, %v252
  %286 = vst.msk [vmem:[%s2 + $0x10] sm:$0xf] %vm281, %v253
  %287 = vst.msk [vmem:[%s2 + $0x14] sm:$0xf] %vm281, %v254
  %288 = vst.msk [vmem:[%s2 + $0x18] sm:$0xf] %vm281, %v255
  %289 = vst.msk [vmem:[%s2 + $0x1c] sm:$0xf] %vm281, %v256
  %290 = vst.msk [vmem:[%s2 + $0x20] sm:$0xf] %vm281, %v257
  %291 = vst.msk [vmem:[%s2 + $0x24] sm:$0xf] %vm281, %v258
  %292 = vst.msk [vmem:[%s2 + $0x28] sm:$0xf] %vm281, %v259
  %293 = vst.msk [vmem:[%s2 + $0x2c] sm:$0xf] %vm281, %v260
  %294 = vst.msk [vmem:[%s2 + $0x30] sm:$0xf] %vm281, %v261
  %295 = vst.msk [vmem:[%s2 + $0x34] sm:$0xf] %vm281, %v262
  %296 = vst.msk [vmem:[%s2 + $0x38] sm:$0xf] %vm281, %v263
  %297 = vst.msk [vmem:[%s2 + $0x3c] sm:$0xf] %vm281, %v264
  %298 = vmatprep.subr.mxu0 0.0
  %299 = vmatpush1.msra.mxu0 %v155
  %300 = vmatprep.subr.mxu0 0.0
  %301 = vmatpush1.msra.mxu0 %v158
  %302 = vmatprep.subr.mxu0 0.0
  %303 = vmatpush1.msra.mxu0 %v163
  %304 = vmatprep.subr.mxu0 0.0
  %305 = vmatpush1.msra.mxu0 %v166
  %306 = vmatprep.subr.mxu0 0.0
  %307 = vmatpush1.msra.mxu0 %v171
  %308 = vmatprep.subr.mxu0 0.0
  %309 = vmatpush1.msra.mxu0 %v174
  %310 = vmatprep.subr.mxu0 0.0
  %311 = vmatpush1.msra.mxu0 %v179
  %312 = vmatprep.subr.mxu0 0.0
  %313 = vmatpush1.msra.mxu0 %v182
  %314 = vmatprep.subr.mxu0 0.0
  %315 = vmatpush1.msra.mxu0 %v187
  %316 = vmatprep.subr.mxu0 0.0
  %317 = vmatpush1.msra.mxu0 %v190
  %318 = vmatprep.subr.mxu0 0.0
  %319 = vmatpush1.msra.mxu0 %v195
  %320 = vmatprep.subr.mxu0 0.0
  %321 = vmatpush1.msra.mxu0 %v198
  %322 = vmatprep.subr.mxu0 0.0
  %323 = vmatpush1.msra.mxu0 %v203
  %324 = vmatprep.subr.mxu0 0.0
  %325 = vmatpush1.msra.mxu0 %v206
  %326 = vmatprep.subr.mxu0 0.0
  %327 = vmatpush1.msra.mxu0 %v211
  %328 = vmatprep.subr.mxu0 0.0
  %329 = vmatpush1.msra.mxu0 %v214
  %330 = vmatprep.subr.mxu0 0.0
  %331 = vmatpush1.msra.mxu0 0.0
  %332 = vmatprep.subr.mxu0 0.0
  %333 = vmatpush1.msra.mxu0 0.0
  %334 = vmatprep.subr.mxu0 0.0
  %335 = vmatpush1.msra.mxu0 0.0
  %336 = vmatprep.subr.mxu0 0.0
  %337 = vmatpush1.msra.mxu0 0.0
  %338 = vmatprep.subr.mxu0 0.0
  %339 = vmatpush1.msra.mxu0 0.0
  %340 = vmatprep.subr.mxu0 0.0
  %341 = vmatpush1.msra.mxu0 0.0
  %342 = vmatprep.subr.mxu0 0.0
  %343 = vmatpush1.msra.mxu0 0.0
  %344 = vmatprep.subr.mxu0 0.0
  %345 = vmatpush1.msra.mxu0 0.0
  %346 = vmatprep.subr.mxu0 0.0
  %347 = vmatpush1.msra.mxu0 0.0
  %348 = vmatprep.subr.mxu0 0.0
  %349 = vmatpush1.msra.mxu0 0.0
  %350 = vmatprep.subr.mxu0 0.0
  %351 = vmatpush1.msra.mxu0 0.0
  %352 = vmatprep.subr.mxu0 0.0
  %353 = vmatpush1.msra.mxu0 0.0
  %354 = vmatprep.subr.mxu0 0.0
  %355 = vmatpush1.msra.mxu0 0.0
  %356 = vmatprep.subr.mxu0 0.0
  %357 = vmatpush1.msra.mxu0 0.0
  %358 = vmatprep.subr.mxu0 0.0
  %359 = vmatpush1.msra.mxu0 0.0
  %360 = vmatprep.subr.mxu0 0.0
  %361 = vmatpush1.msra.mxu0 0.0
  %362 = vmatprep.mubr.f32.mxu0 0.0
  %363 = vmatmul.mubr.f32.gmra.mrb[0].mxu0 1.0
  %v364 = vpop.f32.mrb[0].mxu0
  %v365 = vadd.f32 0.0, %v364
  %v366 = vpop.f32.mrb[0].mxu0
  %367 = vdwg.mxu0
  %368 = vst [vmem:[%s3] sm:$0xff] %v365
  %v369 = vmul.f32 %v155, %v155
  %v370 = vmul.f32 %v158, %v158
  %v371 = vmul.f32 %v163, %v163
  %v372 = vmul.f32 %v166, %v166
  %v373 = vmul.f32 %v171, %v171
  %v374 = vmul.f32 %v174, %v174
  %v375 = vmul.f32 %v179, %v179
  %v376 = vmul.f32 %v182, %v182
  %v377 = vmul.f32 %v187, %v187
  %v378 = vmul.f32 %v190, %v190
  %v379 = vmul.f32 %v195, %v195
  %v380 = vmul.f32 %v198, %v198
  %v381 = vmul.f32 %v203, %v203
  %v382 = vmul.f32 %v206, %v206
  %v383 = vmul.f32 %v211, %v211
  %v384 = vmul.f32 %v214, %v214
  %385 = vmatprep.subr.mxu0 0.0
  %386 = vmatpush1.msra.mxu0 %v369
  %387 = vmatprep.subr.mxu0 0.0
  %388 = vmatpush1.msra.mxu0 %v370
  %389 = vmatprep.subr.mxu0 0.0
  %390 = vmatpush1.msra.mxu0 %v371
  %391 = vmatprep.subr.mxu0 0.0
  %392 = vmatpush1.msra.mxu0 %v372
  %393 = vmatprep.subr.mxu0 0.0
  %394 = vmatpush1.msra.mxu0 %v373
  %395 = vmatprep.subr.mxu0 0.0
  %396 = vmatpush1.msra.mxu0 %v374
  %397 = vmatprep.subr.mxu0 0.0
  %398 = vmatpush1.msra.mxu0 %v375
  %399 = vmatprep.subr.mxu0 0.0
  %400 = vmatpush1.msra.mxu0 %v376
  %401 = vmatprep.subr.mxu0 0.0
  %402 = vmatpush1.msra.mxu0 %v377
  %403 = vmatprep.subr.mxu0 0.0
  %404 = vmatpush1.msra.mxu0 %v378
  %405 = vmatprep.subr.mxu0 0.0
  %406 = vmatpush1.msra.mxu0 %v379
  %407 = vmatprep.subr.mxu0 0.0
  %408 = vmatpush1.msra.mxu0 %v380
  %409 = vmatprep.subr.mxu0 0.0
  %410 = vmatpush1.msra.mxu0 %v381
  %411 = vmatprep.subr.mxu0 0.0
  %412 = vmatpush1.msra.mxu0 %v382
  %413 = vmatprep.subr.mxu0 0.0
  %414 = vmatpush1.msra.mxu0 %v383
  %415 = vmatprep.subr.mxu0 0.0
  %416 = vmatpush1.msra.mxu0 %v384
  %417 = vmatprep.subr.mxu0 0.0
  %418 = vmatpush1.msra.mxu0 0.0
  %419 = vmatprep.subr.mxu0 0.0
  %420 = vmatpush1.msra.mxu0 0.0
  %421 = vmatprep.subr.mxu0 0.0
  %422 = vmatpush1.msra.mxu0 0.0
  %423 = vmatprep.subr.mxu0 0.0
  %424 = vmatpush1.msra.mxu0 0.0
  %425 = vmatprep.subr.mxu0 0.0
  %426 = vmatpush1.msra.mxu0 0.0
  %427 = vmatprep.subr.mxu0 0.0
  %428 = vmatpush1.msra.mxu0 0.0
  %429 = vmatprep.subr.mxu0 0.0
  %430 = vmatpush1.msra.mxu0 0.0
  %431 = vmatprep.subr.mxu0 0.0
  %432 = vmatpush1.msra.mxu0 0.0
  %433 = vmatprep.subr.mxu0 0.0
  %434 = vmatpush1.msra.mxu0 0.0
  %435 = vmatprep.subr.mxu0 0.0
  %436 = vmatpush1.msra.mxu0 0.0
  %437 = vmatprep.subr.mxu0 0.0
  %438 = vmatpush1.msra.mxu0 0.0
  %439 = vmatprep.subr.mxu0 0.0
  %440 = vmatpush1.msra.mxu0 0.0
  %441 = vmatprep.subr.mxu0 0.0
  %442 = vmatpush1.msra.mxu0 0.0
  %443 = vmatprep.subr.mxu0 0.0
  %444 = vmatpush1.msra.mxu0 0.0
  %445 = vmatprep.subr.mxu0 0.0
  %446 = vmatpush1.msra.mxu0 0.0
  %447 = vmatprep.subr.mxu0 0.0
  %448 = vmatpush1.msra.mxu0 0.0
  %449 = vmatprep.mubr.f32.mxu0 0.0
  %450 = vmatmul.mubr.f32.gmra.mrb[0].mxu0 1.0
  %v451 = vpop.f32.mrb[0].mxu0
  %v452 = vadd.f32 0.0, %v451
  %v453 = vpop.f32.mrb[0].mxu0
  %454 = vdwg.mxu0
  %455 = vst [vmem:[%s4] sm:$0xff] %v452
  // Predicated region
  $region10: #{encoder_forward.4} parent=0 // pred_check
    _
  $region11: #{encoder_forward.4} parent=0 // pred_check_branch
    %457 = sbr.rel (0) target = $region13
  $region12: #{encoder_forward.4} parent=0 // pred_region
    _
  $region13: #{encoder_forward.4} parent=0 // pred_fallthru
    _
  // Predicated region
  $region14: #{encoder_forward.4} parent=0 // pred_check
    _
  $region15: #{encoder_forward.4} parent=0 // pred_check_branch
    %459 = sbr.rel (0) target = $region17
  $region16: #{encoder_forward.4} parent=0 // pred_region
    _
  $region17: #{encoder_forward.4} parent=0 // pred_fallthru
    _
  // Predicated region
  $region18: #{encoder_forward.4} parent=0 // pred_check
    _
  $region19: #{encoder_forward.4} parent=0 // pred_check_branch
    %461 = sbr.rel (0) target = $region21
  $region20: #{encoder_forward.4} parent=0 // pred_region
    _
  $region21: #{encoder_forward.4} parent=0 // pred_fallthru
    _
  // Predicated region
  $region22: #{encoder_forward.4} parent=0 // pred_check
    _
  $region23: #{encoder_forward.4} parent=0 // pred_check_branch
    %463 = sbr.rel (0) target = $region25
  $region24: #{encoder_forward.4} parent=0 // pred_region
    _
  $region25: #{encoder_forward.4} parent=0 // pred_fallthru
    _
  // Predicated region
  $region26: #{encoder_forward.4} parent=0 // pred_check
    _
  $region27: #{encoder_forward.4} parent=0 // pred_check_branch
    %465 = sbr.rel (0) target = $region29
  $region28: #{encoder_forward.4} parent=0 // pred_region
    _
  $region29: #{encoder_forward.4} parent=0 // pred_fallthru
    _
  // Predicated region
  $region30: #{encoder_forward.4} parent=0 // pred_check
    _
  $region31: #{encoder_forward.4} parent=0 // pred_check_branch
    %467 = sbr.rel (0) target = $region33
  $region32: #{encoder_forward.4} parent=0 // pred_region
    _
  $region33: #{encoder_forward.4} parent=0 // pred_fallthru
    _

// kernel: encoder_forward.7
$region0: #{encoder_forward.7}
  #allocation0 [shape = 'u32[]', space=smem, size = 0x4, offset = 0x4, fixed_abs, tag = 'smem constant byte address 0x4 - core index']
  #allocation1 [shape = 'u32[144,128]{1,0:T(1,128)}', space=vmem, size = 0x12000, scoped, tag = 'internal scratch']
  %s0 = inlined_call_operand.vmem [shape: bf16[128,8], index: 0, kind: input, shape index: {}]
  %s1 = inlined_call_operand.vmem [shape: f32[1,8], index: 1, kind: input, shape index: {}]
  %s2 = inlined_call_operand.vmem [shape: f32[1,8], index: 2, kind: input, shape index: {}]
  %s3 = inlined_call_operand.vmem [shape: f32[128,8], index: 3, kind: output, shape index: {}]
  %s4 = sld [smem:[#allocation0]]
  $region22: #{encoder_forward.7} parent=0
    _
  %s6 = ssub.s32 1, %s4
  %s7 = scalar_select 0, %s6, %s4
  // Predicated region
  $region2: #{encoder_forward.7} parent=0 // pred_check
    _
  $region3: #{encoder_forward.7} parent=0 // pred_check_branch
    %9 = sbr.rel (0) target = $region5
  $region4: #{encoder_forward.7} parent=0 // pred_region
    _
  $region5: #{encoder_forward.7} parent=0 // pred_fallthru
    _
  // Predicated region
  $region6: #{encoder_forward.7} parent=0 // pred_check
    _
  $region7: #{encoder_forward.7} parent=0 // pred_check_branch
    %11 = sbr.rel (0) target = $region9
  $region8: #{encoder_forward.7} parent=0 // pred_region
    _
  $region9: #{encoder_forward.7} parent=0 // pred_fallthru
    _
  // Predicated region
  $region10: #{encoder_forward.7} parent=0 // pred_check
    _
  $region11: #{encoder_forward.7} parent=0 // pred_check_branch
    %13 = sbr.rel (0) target = $region13
  $region12: #{encoder_forward.7} parent=0 // pred_region
    _
  $region13: #{encoder_forward.7} parent=0 // pred_fallthru
    _
  %v14 = vld [vmem:[%s0] sm:$0xf]
  %v15 = vld [vmem:[%s0 + $0x4] sm:$0xf]
  %v16 = vld [vmem:[%s0 + $0x8] sm:$0xf]
  %v17 = vld [vmem:[%s0 + $0xc] sm:$0xf]
  %v18 = vld [vmem:[%s0 + $0x10] sm:$0xf]
  %v19 = vld [vmem:[%s0 + $0x14] sm:$0xf]
  %v20 = vld [vmem:[%s0 + $0x18] sm:$0xf]
  %v21 = vld [vmem:[%s0 + $0x1c] sm:$0xf]
  %v22 = vld [vmem:[%s0 + $0x20] sm:$0xf]
  %v23 = vld [vmem:[%s0 + $0x24] sm:$0xf]
  %v24 = vld [vmem:[%s0 + $0x28] sm:$0xf]
  %v25 = vld [vmem:[%s0 + $0x2c] sm:$0xf]
  %v26 = vld [vmem:[%s0 + $0x30] sm:$0xf]
  %v27 = vld [vmem:[%s0 + $0x34] sm:$0xf]
  %v28 = vld [vmem:[%s0 + $0x38] sm:$0xf]
  %v29 = vld [vmem:[%s0 + $0x3c] sm:$0xf]
  %v30 = vunpack.c.l.bf16 %v14
  %v31 = vunpack.c.l.bf16 %v15
  %v32 = vunpack.c.l.bf16 %v16
  %v33 = vunpack.c.l.bf16 %v17
  %v34 = vunpack.c.l.bf16 %v18
  %v35 = vunpack.c.l.bf16 %v19
  %v36 = vunpack.c.l.bf16 %v20
  %v37 = vunpack.c.l.bf16 %v21
  %v38 = vunpack.c.l.bf16 %v22
  %v39 = vunpack.c.l.bf16 %v23
  %v40 = vunpack.c.l.bf16 %v24
  %v41 = vunpack.c.l.bf16 %v25
  %v42 = vunpack.c.l.bf16 %v26
  %v43 = vunpack.c.l.bf16 %v27
  %v44 = vunpack.c.l.bf16 %v28
  %v45 = vunpack.c.l.bf16 %v29
  %v46 = vld [vmem:[%s1] sm:$0x1]
  %v48 = vlaneseq
  %v49 = vshrl.u32 %v48, 7
  %v50 = vsub.s32 0, %v49
  %v51 = vrot.slane %v46, %v50
  %v53 = vmul.f32 %v30, %v51
  %v54 = vmul.f32 %v31, %v51
  %v55 = vmul.f32 %v32, %v51
  %v56 = vmul.f32 %v33, %v51
  %v57 = vmul.f32 %v34, %v51
  %v58 = vmul.f32 %v35, %v51
  %v59 = vmul.f32 %v36, %v51
  %v60 = vmul.f32 %v37, %v51
  %v61 = vmul.f32 %v38, %v51
  %v62 = vmul.f32 %v39, %v51
  %v63 = vmul.f32 %v40, %v51
  %v64 = vmul.f32 %v41, %v51
  %v65 = vmul.f32 %v42, %v51
  %v66 = vmul.f32 %v43, %v51
  %v67 = vmul.f32 %v44, %v51
  %v68 = vmul.f32 %v45, %v51
  %v69 = vld [vmem:[%s2] sm:$0x1]
  %v71 = vlaneseq
  %v72 = vshrl.u32 %v71, 7
  %v73 = vsub.s32 0, %v72
  %v74 = vrot.slane %v69, %v73
  %v76 = vadd.f32 %v53, %v74
  %v77 = vadd.f32 %v54, %v74
  %v78 = vadd.f32 %v55, %v74
  %v79 = vadd.f32 %v56, %v74
  %v80 = vadd.f32 %v57, %v74
  %v81 = vadd.f32 %v58, %v74
  %v82 = vadd.f32 %v59, %v74
  %v83 = vadd.f32 %v60, %v74
  %v84 = vadd.f32 %v61, %v74
  %v85 = vadd.f32 %v62, %v74
  %v86 = vadd.f32 %v63, %v74
  %v87 = vadd.f32 %v64, %v74
  %v88 = vadd.f32 %v65, %v74
  %v89 = vadd.f32 %v66, %v74
  %v90 = vadd.f32 %v67, %v74
  %v91 = vadd.f32 %v68, %v74
  %vm92 = vcmp.ge.f32.partialorder %v76, 0.0
  %vm93 = vcmp.ge.f32.partialorder %v77, 0.0
  %vm94 = vcmp.ge.f32.partialorder %v78, 0.0
  %vm95 = vcmp.ge.f32.partialorder %v79, 0.0
  %vm96 = vcmp.ge.f32.partialorder %v80, 0.0
  %vm97 = vcmp.ge.f32.partialorder %v81, 0.0
  %vm98 = vcmp.ge.f32.partialorder %v82, 0.0
  %vm99 = vcmp.ge.f32.partialorder %v83, 0.0
  %vm100 = vcmp.ge.f32.partialorder %v84, 0.0
  %vm101 = vcmp.ge.f32.partialorder %v85, 0.0
  %vm102 = vcmp.ge.f32.partialorder %v86, 0.0
  %vm103 = vcmp.ge.f32.partialorder %v87, 0.0
  %vm104 = vcmp.ge.f32.partialorder %v88, 0.0
  %vm105 = vcmp.ge.f32.partialorder %v89, 0.0
  %vm106 = vcmp.ge.f32.partialorder %v90, 0.0
  %vm107 = vcmp.ge.f32.partialorder %v91, 0.0
  %v108 = vmul.f32 %v76, 0.1
  %v109 = vmul.f32 %v77, 0.1
  %v110 = vmul.f32 %v78, 0.1
  %v111 = vmul.f32 %v79, 0.1
  %v112 = vmul.f32 %v80, 0.1
  %v113 = vmul.f32 %v81, 0.1
  %v114 = vmul.f32 %v82, 0.1
  %v115 = vmul.f32 %v83, 0.1
  %v116 = vmul.f32 %v84, 0.1
  %v117 = vmul.f32 %v85, 0.1
  %v118 = vmul.f32 %v86, 0.1
  %v119 = vmul.f32 %v87, 0.1
  %v120 = vmul.f32 %v88, 0.1
  %v121 = vmul.f32 %v89, 0.1
  %v122 = vmul.f32 %v90, 0.1
  %v123 = vmul.f32 %v91, 0.1
  %v124 = vsel %vm92, %v76, %v108
  %v125 = vsel %vm93, %v77, %v109
  %v126 = vsel %vm94, %v78, %v110
  %v127 = vsel %vm95, %v79, %v111
  %v128 = vsel %vm96, %v80, %v112
  %v129 = vsel %vm97, %v81, %v113
  %v130 = vsel %vm98, %v82, %v114
  %v131 = vsel %vm99, %v83, %v115
  %v132 = vsel %vm100, %v84, %v116
  %v133 = vsel %vm101, %v85, %v117
  %v134 = vsel %vm102, %v86, %v118
  %v135 = vsel %vm103, %v87, %v119
  %v136 = vsel %vm104, %v88, %v120
  %v137 = vsel %vm105, %v89, %v121
  %v138 = vsel %vm106, %v90, %v122
  %v139 = vsel %vm107, %v91, %v123
  %vm140 = vcmask 64512
  %141 = vst.msk [vmem:[%s3] sm:$0xff] %vm140, %v124
  %142 = vst.msk [vmem:[%s3 + $0x8] sm:$0xff] %vm140, %v125
  %143 = vst.msk [vmem:[%s3 + $0x10] sm:$0xff] %vm140, %v126
  %144 = vst.msk [vmem:[%s3 + $0x18] sm:$0xff] %vm140, %v127
  %145 = vst.msk [vmem:[%s3 + $0x20] sm:$0xff] %vm140, %v128
  %146 = vst.msk [vmem:[%s3 + $0x28] sm:$0xff] %vm140, %v129
  %147 = vst.msk [vmem:[%s3 + $0x30] sm:$0xff] %vm140, %v130
  %148 = vst.msk [vmem:[%s3 + $0x38] sm:$0xff] %vm140, %v131
  %149 = vst.msk [vmem:[%s3 + $0x40] sm:$0xff] %vm140, %v132
  %150 = vst.msk [vmem:[%s3 + $0x48] sm:$0xff] %vm140, %v133
  %151 = vst.msk [vmem:[%s3 + $0x50] sm:$0xff] %vm140, %v134
  %152 = vst.msk [vmem:[%s3 + $0x58] sm:$0xff] %vm140, %v135
  %153 = vst.msk [vmem:[%s3 + $0x60] sm:$0xff] %vm140, %v136
  %154 = vst.msk [vmem:[%s3 + $0x68] sm:$0xff] %vm140, %v137
  %155 = vst.msk [vmem:[%s3 + $0x70] sm:$0xff] %vm140, %v138
  %156 = vst.msk [vmem:[%s3 + $0x78] sm:$0xff] %vm140, %v139
  // Predicated region
  $region14: #{encoder_forward.7} parent=0 // pred_check
    _
  $region15: #{encoder_forward.7} parent=0 // pred_check_branch
    %158 = sbr.rel (0) target = $region17
  $region16: #{encoder_forward.7} parent=0 // pred_region
    _
  $region17: #{encoder_forward.7} parent=0 // pred_fallthru
    _
  // Predicated region
  $region18: #{encoder_forward.7} parent=0 // pred_check
    _
  $region19: #{encoder_forward.7} parent=0 // pred_check_branch
    %160 = sbr.rel (0) target = $region21
  $region20: #{encoder_forward.7} parent=0 // pred_region
    _
  $region21: #{encoder_forward.7} parent=0 // pred_fallthru
    _

// kernel: encoder_forward.6
$region0: #{encoder_forward.6}
  #allocation0 [shape = 'u32[]', space=smem, size = 0x4, offset = 0x4, fixed_abs, tag = 'smem constant byte address 0x4 - core index']
  #allocation1 [shape = 'u32[144,128]{1,0:T(1,128)}', space=vmem, size = 0x12000, scoped, tag = 'internal scratch']
  %s0 = inlined_call_operand.vmem [shape: bf16[128,80], index: 0, kind: input, shape index: {}]
  %s1 = inlined_call_operand.vmem [shape: bf16[80,128], index: 1, kind: input, shape index: {}]
  %s2 = inlined_call_operand.vmem [shape: bf16[128,8], index: 2, kind: output, shape index: {0}]
  %s3 = inlined_call_operand.vmem [shape: f32[8,128], index: 3, kind: output, shape index: {1}]
  %s4 = inlined_call_operand.vmem [shape: f32[8,128], index: 4, kind: output, shape index: {2}]
  %5 = xla_tuple %s2, %s3, %s4
  %s6 = sld [smem:[#allocation0]]
  $region34: #{encoder_forward.6} parent=0
    _
  %s8 = ssub.s32 1, %s6
  %s9 = scalar_select 0, %s8, %s6
  // Predicated region
  $region2: #{encoder_forward.6} parent=0 // pred_check
    _
  $region3: #{encoder_forward.6} parent=0 // pred_check_branch
    %11 = sbr.rel (0) target = $region5
  $region4: #{encoder_forward.6} parent=0 // pred_region
    _
  $region5: #{encoder_forward.6} parent=0 // pred_fallthru
    _
  // Predicated region
  $region6: #{encoder_forward.6} parent=0 // pred_check
    _
  $region7: #{encoder_forward.6} parent=0 // pred_check_branch
    %13 = sbr.rel (0) target = $region9
  $region8: #{encoder_forward.6} parent=0 // pred_region
    _
  $region9: #{encoder_forward.6} parent=0 // pred_fallthru
    _
  %v15 = vld [vmem:[%s0] sm:$0xf]
  %v16 = vld [vmem:[%s0 + $0x4] sm:$0xf]
  %v17 = vld [vmem:[%s0 + $0x8] sm:$0xf]
  %v18 = vld [vmem:[%s0 + $0xc] sm:$0xf]
  %v19 = vld [vmem:[%s0 + $0x10] sm:$0xf]
  %v20 = vld [vmem:[%s0 + $0x14] sm:$0xf]
  %v21 = vld [vmem:[%s0 + $0x18] sm:$0xf]
  %v22 = vld [vmem:[%s0 + $0x1c] sm:$0xf]
  %v23 = vld [vmem:[%s0 + $0x20] sm:$0xf]
  %v24 = vld [vmem:[%s0 + $0x24] sm:$0xf]
  %v25 = vld [vmem:[%s0 + $0x28] sm:$0xf]
  %v26 = vld [vmem:[%s0 + $0x2c] sm:$0xf]
  %v27 = vld [vmem:[%s0 + $0x30] sm:$0xf]
  %v28 = vld [vmem:[%s0 + $0x34] sm:$0xf]
  %v29 = vld [vmem:[%s0 + $0x38] sm:$0xf]
  %v30 = vld [vmem:[%s0 + $0x3c] sm:$0xf]
  %v31 = vld [vmem:[%s1] sm:$0xf]
  %v32 = vld [vmem:[%s1 + $0x4] sm:$0xf]
  %v33 = vld [vmem:[%s1 + $0x8] sm:$0xf]
  %v34 = vld [vmem:[%s1 + $0xc] sm:$0xf]
  %v35 = vld [vmem:[%s1 + $0x10] sm:$0xf]
  %v36 = vld [vmem:[%s1 + $0x14] sm:$0xf]
  %v37 = vld [vmem:[%s1 + $0x18] sm:$0xf]
  %v38 = vld [vmem:[%s1 + $0x1c] sm:$0xf]
  %v39 = vld [vmem:[%s1 + $0x20] sm:$0xf]
  %v40 = vld [vmem:[%s1 + $0x24] sm:$0xf]
  %v57 = vunpack.c.l.b16 %v15
  %v58 = vunpack.c.l.b16 %v16
  %v59 = vunpack.c.l.b16 %v17
  %v60 = vunpack.c.l.b16 %v18
  %v61 = vunpack.c.l.b16 %v19
  %v62 = vunpack.c.l.b16 %v20
  %v63 = vunpack.c.l.b16 %v21
  %v64 = vunpack.c.l.b16 %v22
  %v65 = vunpack.c.l.b16 %v23
  %v66 = vunpack.c.l.b16 %v24
  %v67 = vunpack.c.l.b16 %v25
  %v68 = vunpack.c.l.b16 %v26
  %v69 = vunpack.c.l.b16 %v27
  %v70 = vunpack.c.l.b16 %v28
  %v71 = vunpack.c.l.b16 %v29
  %v72 = vunpack.c.l.b16 %v30
  %v73 = vpack.c.b16 %v58, %v57
  %v74 = vpack.c.b16 %v60, %v59
  %v75 = vpack.c.b16 %v62, %v61
  %v76 = vpack.c.b16 %v64, %v63
  %v77 = vpack.c.b16 %v66, %v65
  %v78 = vpack.c.b16 %v68, %v67
  %v79 = vpack.c.b16 %v70, %v69
  %v80 = vpack.c.b16 %v72, %v71
  %v91 = vunpack.c.l.b16 %v31
  %v92 = vunpack.c.l.b16 %v32
  %v93 = vunpack.c.l.b16 %v33
  %v94 = vunpack.c.l.b16 %v34
  %v95 = vunpack.c.l.b16 %v35
  %v96 = vunpack.c.l.b16 %v36
  %v97 = vunpack.c.l.b16 %v37
  %v98 = vunpack.c.l.b16 %v38
  %v99 = vunpack.c.l.b16 %v39
  %v100 = vunpack.c.l.b16 %v40
  %v101 = vpack.c.b16 %v92, %v91
  %v102 = vpack.c.b16 %v94, %v93
  %v103 = vpack.c.b16 %v96, %v95
  %v104 = vpack.c.b16 %v98, %v97
  %v105 = vpack.c.b16 %v100, %v99
  %vm111 = vcmask 654336
  %v113 = vsel %vm111, %v73, 0
  %v116 = vsel %vm111, %v74, 0
  %v119 = vsel %vm111, %v75, 0
  %v122 = vsel %vm111, %v76, 0
  %v125 = vsel %vm111, %v77, 0
  %v128 = vsel %vm111, %v78, 0
  %v131 = vsel %vm111, %v79, 0
  %v134 = vsel %vm111, %v80, 0
  %136 = vmatprep.subr.bf16.mxu0 0
  %137 = vmatpush1.bf16.msra.mxu0 %v101
  %138 = vmatprep.subr.bf16.mxu0 0
  %139 = vmatpush1.bf16.msra.mxu0 %v102
  %140 = vmatprep.subr.bf16.mxu0 0
  %141 = vmatpush1.bf16.msra.mxu0 %v103
  %142 = vmatprep.subr.bf16.mxu0 0
  %143 = vmatpush1.bf16.msra.mxu0 %v104
  %144 = vmatprep.subr.bf16.mxu0 0
  %145 = vmatpush1.bf16.msra.mxu0 %v105
  %146 = vmatprep.subr.bf16.mxu0 0
  %147 = vmatpush1.bf16.msra.mxu0 0
  %148 = vmatprep.subr.bf16.mxu0 0
  %149 = vmatpush1.bf16.msra.mxu0 0
  %150 = vmatprep.subr.bf16.mxu0 0
  %151 = vmatpush1.bf16.msra.mxu0 0
  %152 = vmatprep.subr.bf16.mxu0 0
  %153 = vmatpush1.bf16.msra.mxu0 0
  %154 = vmatprep.subr.bf16.mxu0 0
  %155 = vmatpush1.bf16.msra.mxu0 0
  %156 = vmatprep.subr.bf16.mxu0 0
  %157 = vmatpush1.bf16.msra.mxu0 0
  %158 = vmatprep.subr.bf16.mxu0 0
  %159 = vmatpush1.bf16.msra.mxu0 0
  %160 = vmatprep.subr.bf16.mxu0 0
  %161 = vmatpush1.bf16.msra.mxu0 0
  %162 = vmatprep.subr.bf16.mxu0 0
  %163 = vmatpush1.bf16.msra.mxu0 0
  %164 = vmatprep.subr.bf16.mxu0 0
  %165 = vmatpush1.bf16.msra.mxu0 0
  %166 = vmatprep.subr.bf16.mxu0 0
  %167 = vmatpush1.bf16.msra.mxu0 0
  %168 = vmatprep.mubr.bf16.mxu0 0
  %169 = vmatmul.mubr.bf16.gmra.mrb[0].mxu0 %v113
  %v170 = vpop.f32.mrb[0].mxu0
  %v171 = vadd.f32 0.0, %v170
  %v172 = vpop.f32.mrb[0].mxu0
  %v173 = vpop.f32.mrb[0].mxu0
  %v174 = vadd.f32 0.0, %v173
  %v175 = vpop.f32.mrb[0].mxu0
  %176 = vmatprep.mubr.bf16.mxu0 0
  %177 = vmatmul.mubr.bf16.gmra.mrb[0].mxu0 %v116
  %v178 = vpop.f32.mrb[0].mxu0
  %v179 = vadd.f32 0.0, %v178
  %v180 = vpop.f32.mrb[0].mxu0
  %v181 = vpop.f32.mrb[0].mxu0
  %v182 = vadd.f32 0.0, %v181
  %v183 = vpop.f32.mrb[0].mxu0
  %184 = vmatprep.mubr.bf16.mxu0 0
  %185 = vmatmul.mubr.bf16.gmra.mrb[0].mxu0 %v119
  %v186 = vpop.f32.mrb[0].mxu0
  %v187 = vadd.f32 0.0, %v186
  %v188 = vpop.f32.mrb[0].mxu0
  %v189 = vpop.f32.mrb[0].mxu0
  %v190 = vadd.f32 0.0, %v189
  %v191 = vpop.f32.mrb[0].mxu0
  %192 = vmatprep.mubr.bf16.mxu0 0
  %193 = vmatmul.mubr.bf16.gmra.mrb[0].mxu0 %v122
  %v194 = vpop.f32.mrb[0].mxu0
  %v195 = vadd.f32 0.0, %v194
  %v196 = vpop.f32.mrb[0].mxu0
  %v197 = vpop.f32.mrb[0].mxu0
  %v198 = vadd.f32 0.0, %v197
  %v199 = vpop.f32.mrb[0].mxu0
  %200 = vmatprep.mubr.bf16.mxu0 0
  %201 = vmatmul.mubr.bf16.gmra.mrb[0].mxu0 %v125
  %v202 = vpop.f32.mrb[0].mxu0
  %v203 = vadd.f32 0.0, %v202
  %v204 = vpop.f32.mrb[0].mxu0
  %v205 = vpop.f32.mrb[0].mxu0
  %v206 = vadd.f32 0.0, %v205
  %v207 = vpop.f32.mrb[0].mxu0
  %208 = vmatprep.mubr.bf16.mxu0 0
  %209 = vmatmul.mubr.bf16.gmra.mrb[0].mxu0 %v128
  %v210 = vpop.f32.mrb[0].mxu0
  %v211 = vadd.f32 0.0, %v210
  %v212 = vpop.f32.mrb[0].mxu0
  %v213 = vpop.f32.mrb[0].mxu0
  %v214 = vadd.f32 0.0, %v213
  %v215 = vpop.f32.mrb[0].mxu0
  %216 = vmatprep.mubr.bf16.mxu0 0
  %217 = vmatmul.mubr.bf16.gmra.mrb[0].mxu0 %v131
  %v218 = vpop.f32.mrb[0].mxu0
  %v219 = vadd.f32 0.0, %v218
  %v220 = vpop.f32.mrb[0].mxu0
  %v221 = vpop.f32.mrb[0].mxu0
  %v222 = vadd.f32 0.0, %v221
  %v223 = vpop.f32.mrb[0].mxu0
  %224 = vmatprep.mubr.bf16.mxu0 0
  %225 = vmatmul.mubr.bf16.gmra.mrb[0].mxu0 %v134
  %v226 = vpop.f32.mrb[0].mxu0
  %v227 = vadd.f32 0.0, %v226
  %v228 = vpop.f32.mrb[0].mxu0
  %v229 = vpop.f32.mrb[0].mxu0
  %v230 = vadd.f32 0.0, %v229
  %v231 = vpop.f32.mrb[0].mxu0
  %232 = vdwg.mxu0
  %v233 = vpack.c.bf16 %v174, %v171
  %v234 = vpack.c.bf16 %v182, %v179
  %v235 = vpack.c.bf16 %v190, %v187
  %v236 = vpack.c.bf16 %v198, %v195
  %v237 = vpack.c.bf16 %v206, %v203
  %v238 = vpack.c.bf16 %v214, %v211
  %v239 = vpack.c.bf16 %v222, %v219
  %v240 = vpack.c.bf16 %v230, %v227
  %v249 = vunpack.c.l.b16 %v233
  %v250 = vunpack.c.h.b16 %v233
  %v251 = vunpack.c.l.b16 %v234
  %v252 = vunpack.c.h.b16 %v234
  %v253 = vunpack.c.l.b16 %v235
  %v254 = vunpack.c.h.b16 %v235
  %v255 = vunpack.c.l.b16 %v236
  %v256 = vunpack.c.h.b16 %v236
  %v257 = vunpack.c.l.b16 %v237
  %v258 = vunpack.c.h.b16 %v237
  %v259 = vunpack.c.l.b16 %v238
  %v260 = vunpack.c.h.b16 %v238
  %v261 = vunpack.c.l.b16 %v239
  %v262 = vunpack.c.h.b16 %v239
  %v263 = vunpack.c.l.b16 %v240
  %v264 = vunpack.c.h.b16 %v240
  %v265 = vpack.c.b16 %v249, %v249
  %v266 = vpack.c.b16 %v250, %v250
  %v267 = vpack.c.b16 %v251, %v251
  %v268 = vpack.c.b16 %v252, %v252
  %v269 = vpack.c.b16 %v253, %v253
  %v270 = vpack.c.b16 %v254, %v254
  %v271 = vpack.c.b16 %v255, %v255
  %v272 = vpack.c.b16 %v256, %v256
  %v273 = vpack.c.b16 %v257, %v257
  %v274 = vpack.c.b16 %v258, %v258
  %v275 = vpack.c.b16 %v259, %v259
  %v276 = vpack.c.b16 %v260, %v260
  %v277 = vpack.c.b16 %v261, %v261
  %v278 = vpack.c.b16 %v262, %v262
  %v279 = vpack.c.b16 %v263, %v263
  %v280 = vpack.c.b16 %v264, %v264
  %vm297 = vcmask 60416
  %298 = vst.msk [vmem:[%s2] sm:$0xf] %vm297, %v265
  %299 = vst.msk [vmem:[%s2 + $0x4] sm:$0xf] %vm297, %v266
  %300 = vst.msk [vmem:[%s2 + $0x8] sm:$0xf] %vm297, %v267
  %301 = vst.msk [vmem:[%s2 + $0xc] sm:$0xf] %vm297, %v268
  %302 = vst.msk [vmem:[%s2 + $0x10] sm:$0xf] %vm297, %v269
  %303 = vst.msk [vmem:[%s2 + $0x14] sm:$0xf] %vm297, %v270
  %304 = vst.msk [vmem:[%s2 + $0x18] sm:$0xf] %vm297, %v271
  %305 = vst.msk [vmem:[%s2 + $0x1c] sm:$0xf] %vm297, %v272
  %306 = vst.msk [vmem:[%s2 + $0x20] sm:$0xf] %vm297, %v273
  %307 = vst.msk [vmem:[%s2 + $0x24] sm:$0xf] %vm297, %v274
  %308 = vst.msk [vmem:[%s2 + $0x28] sm:$0xf] %vm297, %v275
  %309 = vst.msk [vmem:[%s2 + $0x2c] sm:$0xf] %vm297, %v276
  %310 = vst.msk [vmem:[%s2 + $0x30] sm:$0xf] %vm297, %v277
  %311 = vst.msk [vmem:[%s2 + $0x34] sm:$0xf] %vm297, %v278
  %312 = vst.msk [vmem:[%s2 + $0x38] sm:$0xf] %vm297, %v279
  %313 = vst.msk [vmem:[%s2 + $0x3c] sm:$0xf] %vm297, %v280
  %314 = vmatprep.subr.mxu0 0.0
  %315 = vmatpush1.msra.mxu0 %v171
  %316 = vmatprep.subr.mxu0 0.0
  %317 = vmatpush1.msra.mxu0 %v174
  %318 = vmatprep.subr.mxu0 0.0
  %319 = vmatpush1.msra.mxu0 %v179
  %320 = vmatprep.subr.mxu0 0.0
  %321 = vmatpush1.msra.mxu0 %v182
  %322 = vmatprep.subr.mxu0 0.0
  %323 = vmatpush1.msra.mxu0 %v187
  %324 = vmatprep.subr.mxu0 0.0
  %325 = vmatpush1.msra.mxu0 %v190
  %326 = vmatprep.subr.mxu0 0.0
  %327 = vmatpush1.msra.mxu0 %v195
  %328 = vmatprep.subr.mxu0 0.0
  %329 = vmatpush1.msra.mxu0 %v198
  %330 = vmatprep.subr.mxu0 0.0
  %331 = vmatpush1.msra.mxu0 %v203
  %332 = vmatprep.subr.mxu0 0.0
  %333 = vmatpush1.msra.mxu0 %v206
  %334 = vmatprep.subr.mxu0 0.0
  %335 = vmatpush1.msra.mxu0 %v211
  %336 = vmatprep.subr.mxu0 0.0
  %337 = vmatpush1.msra.mxu0 %v214
  %338 = vmatprep.subr.mxu0 0.0
  %339 = vmatpush1.msra.mxu0 %v219
  %340 = vmatprep.subr.mxu0 0.0
  %341 = vmatpush1.msra.mxu0 %v222
  %342 = vmatprep.subr.mxu0 0.0
  %343 = vmatpush1.msra.mxu0 %v227
  %344 = vmatprep.subr.mxu0 0.0
  %345 = vmatpush1.msra.mxu0 %v230
  %346 = vmatprep.subr.mxu0 0.0
  %347 = vmatpush1.msra.mxu0 0.0
  %348 = vmatprep.subr.mxu0 0.0
  %349 = vmatpush1.msra.mxu0 0.0
  %350 = vmatprep.subr.mxu0 0.0
  %351 = vmatpush1.msra.mxu0 0.0
  %352 = vmatprep.subr.mxu0 0.0
  %353 = vmatpush1.msra.mxu0 0.0
  %354 = vmatprep.subr.mxu0 0.0
  %355 = vmatpush1.msra.mxu0 0.0
  %356 = vmatprep.subr.mxu0 0.0
  %357 = vmatpush1.msra.mxu0 0.0
  %358 = vmatprep.subr.mxu0 0.0
  %359 = vmatpush1.msra.mxu0 0.0
  %360 = vmatprep.subr.mxu0 0.0
  %361 = vmatpush1.msra.mxu0 0.0
  %362 = vmatprep.subr.mxu0 0.0
  %363 = vmatpush1.msra.mxu0 0.0
  %364 = vmatprep.subr.mxu0 0.0
  %365 = vmatpush1.msra.mxu0 0.0
  %366 = vmatprep.subr.mxu0 0.0
  %367 = vmatpush1.msra.mxu0 0.0
  %368 = vmatprep.subr.mxu0 0.0
  %369 = vmatpush1.msra.mxu0 0.0
  %370 = vmatprep.subr.mxu0 0.0
  %371 = vmatpush1.msra.mxu0 0.0
  %372 = vmatprep.subr.mxu0 0.0
  %373 = vmatpush1.msra.mxu0 0.0
  %374 = vmatprep.subr.mxu0 0.0
  %375 = vmatpush1.msra.mxu0 0.0
  %376 = vmatprep.subr.mxu0 0.0
  %377 = vmatpush1.msra.mxu0 0.0
  %378 = vmatprep.mubr.f32.mxu0 0.0
  %379 = vmatmul.mubr.f32.gmra.mrb[0].mxu0 1.0
  %v380 = vpop.f32.mrb[0].mxu0
  %v381 = vadd.f32 0.0, %v380
  %v382 = vpop.f32.mrb[0].mxu0
  %383 = vdwg.mxu0
  %384 = vst [vmem:[%s3] sm:$0xff] %v381
  %v385 = vmul.f32 %v171, %v171
  %v386 = vmul.f32 %v174, %v174
  %v387 = vmul.f32 %v179, %v179
  %v388 = vmul.f32 %v182, %v182
  %v389 = vmul.f32 %v187, %v187
  %v390 = vmul.f32 %v190, %v190
  %v391 = vmul.f32 %v195, %v195
  %v392 = vmul.f32 %v198, %v198
  %v393 = vmul.f32 %v203, %v203
  %v394 = vmul.f32 %v206, %v206
  %v395 = vmul.f32 %v211, %v211
  %v396 = vmul.f32 %v214, %v214
  %v397 = vmul.f32 %v219, %v219
  %v398 = vmul.f32 %v222, %v222
  %v399 = vmul.f32 %v227, %v227
  %v400 = vmul.f32 %v230, %v230
  %401 = vmatprep.subr.mxu0 0.0
  %402 = vmatpush1.msra.mxu0 %v385
  %403 = vmatprep.subr.mxu0 0.0
  %404 = vmatpush1.msra.mxu0 %v386
  %405 = vmatprep.subr.mxu0 0.0
  %406 = vmatpush1.msra.mxu0 %v387
  %407 = vmatprep.subr.mxu0 0.0
  %408 = vmatpush1.msra.mxu0 %v388
  %409 = vmatprep.subr.mxu0 0.0
  %410 = vmatpush1.msra.mxu0 %v389
  %411 = vmatprep.subr.mxu0 0.0
  %412 = vmatpush1.msra.mxu0 %v390
  %413 = vmatprep.subr.mxu0 0.0
  %414 = vmatpush1.msra.mxu0 %v391
  %415 = vmatprep.subr.mxu0 0.0
  %416 = vmatpush1.msra.mxu0 %v392
  %417 = vmatprep.subr.mxu0 0.0
  %418 = vmatpush1.msra.mxu0 %v393
  %419 = vmatprep.subr.mxu0 0.0
  %420 = vmatpush1.msra.mxu0 %v394
  %421 = vmatprep.subr.mxu0 0.0
  %422 = vmatpush1.msra.mxu0 %v395
  %423 = vmatprep.subr.mxu0 0.0
  %424 = vmatpush1.msra.mxu0 %v396
  %425 = vmatprep.subr.mxu0 0.0
  %426 = vmatpush1.msra.mxu0 %v397
  %427 = vmatprep.subr.mxu0 0.0
  %428 = vmatpush1.msra.mxu0 %v398
  %429 = vmatprep.subr.mxu0 0.0
  %430 = vmatpush1.msra.mxu0 %v399
  %431 = vmatprep.subr.mxu0 0.0
  %432 = vmatpush1.msra.mxu0 %v400
  %433 = vmatprep.subr.mxu0 0.0
  %434 = vmatpush1.msra.mxu0 0.0
  %435 = vmatprep.subr.mxu0 0.0
  %436 = vmatpush1.msra.mxu0 0.0
  %437 = vmatprep.subr.mxu0 0.0
  %438 = vmatpush1.msra.mxu0 0.0
  %439 = vmatprep.subr.mxu0 0.0
  %440 = vmatpush1.msra.mxu0 0.0
  %441 = vmatprep.subr.mxu0 0.0
  %442 = vmatpush1.msra.mxu0 0.0
  %443 = vmatprep.subr.mxu0 0.0
  %444 = vmatpush1.msra.mxu0 0.0
  %445 = vmatprep.subr.mxu0 0.0
  %446 = vmatpush1.msra.mxu0 0.0
  %447 = vmatprep.subr.mxu0 0.0
  %448 = vmatpush1.msra.mxu0 0.0
  %449 = vmatprep.subr.mxu0 0.0
  %450 = vmatpush1.msra.mxu0 0.0
  %451 = vmatprep.subr.mxu0 0.0
  %452 = vmatpush1.msra.mxu0 0.0
  %453 = vmatprep.subr.mxu0 0.0
  %454 = vmatpush1.msra.mxu0 0.0
  %455 = vmatprep.subr.mxu0 0.0
  %456 = vmatpush1.msra.mxu0 0.0
  %457 = vmatprep.subr.mxu0 0.0
  %458 = vmatpush1.msra.mxu0 0.0
  %459 = vmatprep.subr.mxu0 0.0
  %460 = vmatpush1.msra.mxu0 0.0
  %461 = vmatprep.subr.mxu0 0.0
  %462 = vmatpush1.msra.mxu0 0.0
  %463 = vmatprep.subr.mxu0 0.0
  %464 = vmatpush1.msra.mxu0 0.0
  %465 = vmatprep.mubr.f32.mxu0 0.0
  %466 = vmatmul.mubr.f32.gmra.mrb[0].mxu0 1.0
  %v467 = vpop.f32.mrb[0].mxu0
  %v468 = vadd.f32 0.0, %v467
  %v469 = vpop.f32.mrb[0].mxu0
  %470 = vdwg.mxu0
  %471 = vst [vmem:[%s4] sm:$0xff] %v468
  // Predicated region
  $region10: #{encoder_forward.6} parent=0 // pred_check
    _
  $region11: #{encoder_forward.6} parent=0 // pred_check_branch
    %473 = sbr.rel (0) target = $region13
  $region12: #{encoder_forward.6} parent=0 // pred_region
    _
  $region13: #{encoder_forward.6} parent=0 // pred_fallthru
    _
  // Predicated region
  $region14: #{encoder_forward.6} parent=0 // pred_check
    _
  $region15: #{encoder_forward.6} parent=0 // pred_check_branch
    %475 = sbr.rel (0) target = $region17
  $region16: #{encoder_forward.6} parent=0 // pred_region
    _
  $region17: #{encoder_forward.6} parent=0 // pred_fallthru
    _
  // Predicated region
  $region18: #{encoder_forward.6} parent=0 // pred_check
    _
  $region19: #{encoder_forward.6} parent=0 // pred_check_branch
    %477 = sbr.rel (0) target = $region21
  $region20: #{encoder_forward.6} parent=0 // pred_region
    _
  $region21: #{encoder_forward.6} parent=0 // pred_fallthru
    _
  // Predicated region
  $region22: #{encoder_forward.6} parent=0 // pred_check
    _
  $region23: #{encoder_forward.6} parent=0 // pred_check_branch
    %479 = sbr.rel (0) target = $region25
  $region24: #{encoder_forward.6} parent=0 // pred_region
    _
  $region25: #{encoder_forward.6} parent=0 // pred_fallthru
    _
  // Predicated region
  $region26: #{encoder_forward.6} parent=0 // pred_check
    _
  $region27: #{encoder_forward.6} parent=0 // pred_check_branch
    %481 = sbr.rel (0) target = $region29
  $region28: #{encoder_forward.6} parent=0 // pred_region
    _
  $region29: #{encoder_forward.6} parent=0 // pred_fallthru
    _
  // Predicated region
  $region30: #{encoder_forward.6} parent=0 // pred_check
    _
  $region31: #{encoder_forward.6} parent=0 // pred_check_branch
    %483 = sbr.rel (0) target = $region33
  $region32: #{encoder_forward.6} parent=0 // pred_region
    _
  $region33: #{encoder_forward.6} parent=0 // pred_fallthru
    _

</llo_original>
